<compile_context>
chip_gen: v7x
topology: tpu7x:2x2x1
jax: 0.10.0
libtpu: 0.0.40
codegen_flags: <defaults>
</compile_context>

<pallas_src>
import jax
import jax.numpy as jnp
from jax.experimental import pallas as pl
from jax.experimental.pallas import tpu as pltpu


# ----------------------------------------------------------------------------
# Kernel 1: forward with prev_h (skip_connect branch).
# Grid = (row tiles, source-node contraction tiles).
# ----------------------------------------------------------------------------
def _union_rgcn_skip_kernel(h_ref, prev_ref, a_ref, t_ref, mask_ref, norm_ref,
                            hw_ref, relw_ref, w_loop2_ref, w_skip_ref,
                            b_skip_ref, out_ref, acc_ref):
    k = pl.program_id(1)

    @pl.when(k == 0)
    def _init():
        # Relation contribution: T @ relW  (tiny, done once per row tile).
        acc_ref[...] = jnp.dot(t_ref[...], relw_ref[...],
                               preferred_element_type=jnp.float32)

    # Dominant matmul: A-tile (int8 counts) @ hW-tile.  int8 -> f32 -> bf16
    # upcast rides in idle VPU slots; the stream is HBM-bound on A's bytes.
    a_bf16 = a_ref[...].astype(jnp.float32).astype(jnp.bfloat16)
    acc_ref[...] += jnp.dot(a_bf16, hw_ref[...],
                            preferred_element_type=jnp.float32)

    @pl.when(k == pl.num_programs(1) - 1)
    def _finalize():
        f = out_ref.shape[-1]
        h = h_ref[...]                                # (tm, F) bf16
        prev = prev_ref[...]                          # (tm, F) bf16

        # Self-loop: one MXU pass for both variants: h @ [W_loop | W_evolve].
        loop2 = jnp.dot(h, w_loop2_ref[...], preferred_element_type=jnp.float32)
        loop_plain = loop2[:, :f]
        loop_evolve = loop2[:, f:]
        mask = mask_ref[...]                          # 1.0 iff in_degree > 0
        loop_msg = loop_evolve + mask * (loop_plain - loop_evolve)

        # Skip gate: sigmoid(prev @ W_skip + b)  (EUP handles the sigmoid).
        gate = jax.nn.sigmoid(
            jnp.dot(prev, w_skip_ref[...], preferred_element_type=jnp.float32)
            + b_skip_ref[...])

        agg = acc_ref[...] * norm_ref[...]
        prev_f32 = prev.astype(jnp.float32)
        node = prev_f32 + gate * (agg + loop_msg - prev_f32)   # FMA form
        out_ref[...] = jnp.maximum(node, 0.0)                  # ReLU


# ----------------------------------------------------------------------------
# Kernel 2: forward without prev_h (no skip gate).
# ----------------------------------------------------------------------------
def _union_rgcn_base_kernel(h_ref, a_ref, t_ref, mask_ref, norm_ref,
                            hw_ref, relw_ref, w_loop2_ref, out_ref, acc_ref):
    k = pl.program_id(1)

    @pl.when(k == 0)
    def _init():
        acc_ref[...] = jnp.dot(t_ref[...], relw_ref[...],
                               preferred_element_type=jnp.float32)

    a_bf16 = a_ref[...].astype(jnp.float32).astype(jnp.bfloat16)
    acc_ref[...] += jnp.dot(a_bf16, hw_ref[...],
                            preferred_element_type=jnp.float32)

    @pl.when(k == pl.num_programs(1) - 1)
    def _finalize():
        f = out_ref.shape[-1]
        loop2 = jnp.dot(h_ref[...], w_loop2_ref[...],
                        preferred_element_type=jnp.float32)
        loop_plain = loop2[:, :f]
        loop_evolve = loop2[:, f:]
        mask = mask_ref[...]
        loop_msg = loop_evolve + mask * (loop_plain - loop_evolve)
        agg = acc_ref[...] * norm_ref[...]
        out_ref[...] = jnp.maximum(agg + loop_msg, 0.0)


# ----------------------------------------------------------------------------
# Wrapper helpers.
# ----------------------------------------------------------------------------
_HP = jax.lax.Precision.HIGHEST


def _fold_weight_neighbor(h, rel_emb, w_neighbor):
    f32 = lambda x: x.astype(jnp.float32)
    hW = jnp.dot(f32(h), f32(w_neighbor), precision=_HP).astype(jnp.bfloat16)
    relW = jnp.dot(f32(rel_emb), f32(w_neighbor),
                   precision=_HP).astype(jnp.bfloat16)
    return hW, relW


def _pad_contraction(A_i8, hW, tile_k):
    """Zero-pad the source-node (contraction) dim to a multiple of tile_k."""
    n_src = A_i8.shape[1]
    if n_src <= tile_k:
        return A_i8, hW, n_src, 1
    k_steps = pl.cdiv(n_src, tile_k)
    pad = k_steps * tile_k - n_src
    if pad:
        A_i8 = jnp.pad(A_i8, ((0, 0), (0, pad)))
        hW = jnp.pad(hW, ((0, pad), (0, 0)))
    return A_i8, hW, tile_k, k_steps


_COMPILER_PARAMS = pltpu.CompilerParams(
    dimension_semantics=("parallel", "arbitrary"),
    vmem_limit_bytes=32 * 1024 * 1024)


# ----------------------------------------------------------------------------
# Wrappers: tile over destination nodes (rows) and the source-node contraction
# axis; weights / relation tables are resident (constant index_map).
# ----------------------------------------------------------------------------
def union_rgcn_forward_skip(h, prev_h, A_i8, T, mask, norm, rel_emb,
                            loop_w, evolve_w, skip_w, skip_b, w_neighbor,
                            *, tile_n=128, tile_k=256):
    n, f = h.shape
    r = rel_emb.shape[0]
    tile_n = max(8, min(tile_n, n))

    hW, relW = _fold_weight_neighbor(h, rel_emb, w_neighbor)
    A_i8, hW, tile_k, k_steps = _pad_contraction(A_i8, hW, tile_k)
    w_loop2 = jnp.concatenate([loop_w, evolve_w], axis=1)          # (F, 2F)
    b_skip = skip_b.reshape(1, f).astype(jnp.float32)

    grid = (pl.cdiv(n, tile_n), k_steps)
    return pl.pallas_call(
        _union_rgcn_skip_kernel,
        out_shape=jax.ShapeDtypeStruct((n, f), jnp.float32),
        grid_spec=pltpu.PrefetchScalarGridSpec(
            num_scalar_prefetch=0,
            grid=grid,
            in_specs=[
                pl.BlockSpec((tile_n, f), lambda i, k: (i, 0)),       # h rows
                pl.BlockSpec((tile_n, f), lambda i, k: (i, 0)),       # prev_h
                pl.BlockSpec((tile_n, tile_k), lambda i, k: (i, k)),  # A (int8)
                pl.BlockSpec((tile_n, r), lambda i, k: (i, 0)),       # T counts
                pl.BlockSpec((tile_n, 1), lambda i, k: (i, 0)),       # deg mask
                pl.BlockSpec((tile_n, 1), lambda i, k: (i, 0)),       # norm
                pl.BlockSpec((tile_k, f), lambda i, k: (k, 0)),       # hW chunk
                pl.BlockSpec((r, f), lambda i, k: (0, 0)),            # relW
                pl.BlockSpec((f, 2 * f), lambda i, k: (0, 0)),        # [Wl|We]
                pl.BlockSpec((f, f), lambda i, k: (0, 0)),            # W_skip
                pl.BlockSpec((1, f), lambda i, k: (0, 0)),            # b_skip
            ],
            out_specs=pl.BlockSpec((tile_n, f), lambda i, k: (i, 0)),
            scratch_shapes=[pltpu.VMEM((tile_n, f), jnp.float32)],
        ),
        compiler_params=_COMPILER_PARAMS,
    )(h, prev_h, A_i8, T, mask, norm, hW, relW, w_loop2, skip_w, b_skip)


def union_rgcn_forward_base(h, A_i8, T, mask, norm, rel_emb,
                            loop_w, evolve_w, w_neighbor,
                            *, tile_n=128, tile_k=256):
    n, f = h.shape
    r = rel_emb.shape[0]
    tile_n = max(8, min(tile_n, n))

    hW, relW = _fold_weight_neighbor(h, rel_emb, w_neighbor)
    A_i8, hW, tile_k, k_steps = _pad_contraction(A_i8, hW, tile_k)
    w_loop2 = jnp.concatenate([loop_w, evolve_w], axis=1)          # (F, 2F)

    grid = (pl.cdiv(n, tile_n), k_steps)
    return pl.pallas_call(
        _union_rgcn_base_kernel,
        out_shape=jax.ShapeDtypeStruct((n, f), jnp.float32),
        grid_spec=pltpu.PrefetchScalarGridSpec(
            num_scalar_prefetch=0,
            grid=grid,
            in_specs=[
                pl.BlockSpec((tile_n, f), lambda i, k: (i, 0)),       # h rows
                pl.BlockSpec((tile_n, tile_k), lambda i, k: (i, k)),  # A (int8)
                pl.BlockSpec((tile_n, r), lambda i, k: (i, 0)),       # T counts
                pl.BlockSpec((tile_n, 1), lambda i, k: (i, 0)),       # deg mask
                pl.BlockSpec((tile_n, 1), lambda i, k: (i, 0)),       # norm
                pl.BlockSpec((tile_k, f), lambda i, k: (k, 0)),       # hW chunk
                pl.BlockSpec((r, f), lambda i, k: (0, 0)),            # relW
                pl.BlockSpec((f, 2 * f), lambda i, k: (0, 0)),        # [Wl|We]
            ],
            out_specs=pl.BlockSpec((tile_n, f), lambda i, k: (i, 0)),
            scratch_shapes=[pltpu.VMEM((tile_n, f), jnp.float32)],
        ),
        compiler_params=_COMPILER_PARAMS,
    )(h, A_i8, T, mask, norm, hW, relW, w_loop2)


# ----------------------------------------------------------------------------
# Pure-JAX reference mirroring the PyTorch forward and the kernel's numerics
# (bf16 weights/activations, bf16 hW/relW, f32 accumulation).
# ----------------------------------------------------------------------------
def _ref_forward(h, prev_h, A_counts, T_counts, mask, norm, rel_emb,
                 loop_w, evolve_w, skip_w, skip_b, w_neighbor):
    f32 = lambda x: x.astype(jnp.float32)
    hW = jnp.dot(f32(h), f32(w_neighbor), precision=_HP).astype(jnp.bfloat16)
    relW = jnp.dot(f32(rel_emb), f32(w_neighbor),
                   precision=_HP).astype(jnp.bfloat16)
    agg = (jnp.dot(f32(A_counts), f32(hW), precision=_HP)
           + jnp.dot(f32(T_counts), f32(relW), precision=_HP)) * norm
    loop_plain = jnp.dot(f32(h), f32(loop_w), precision=_HP)
    loop_evolve = jnp.dot(f32(h), f32(evolve_w), precision=_HP)
    loop_msg = loop_evolve + mask * (loop_plain - loop_evolve)
    if prev_h is not None:
        gate = jax.nn.sigmoid(
            jnp.dot(f32(prev_h), f32(skip_w), precision=_HP)
            + skip_b.reshape(1, -1).astype(jnp.float32))
        prev_f32 = f32(prev_h)
        node = prev_f32 + gate * (agg + loop_msg - prev_f32)
    else:
        node = agg + loop_msg
    return jnp.maximum(node, 0.0)


if __name__ == "__main__":
    # Small deterministic graph.  propagate's msg_func views src features as
    # out_feat, so in_feat == out_feat.
    N, F, R, E = 512, 128, 16, 2048     # nodes, features, relations, edges
    TILE_N, TILE_K = 128, 256           # grid = (4, 2): >=2 row tiles per core

    key = jax.random.PRNGKey(0)
    keys = jax.random.split(key, 10)

    h = jax.random.normal(keys[0], (N, F), jnp.float32).astype(jnp.bfloat16)
    prev_h = jax.random.normal(keys[1], (N, F), jnp.float32).astype(jnp.bfloat16)
    rel_emb = jax.random.normal(keys[2], (R, F), jnp.float32).astype(jnp.bfloat16)

    gain = jnp.sqrt(2.0)                # xavier_uniform with relu gain
    def xavier(k, shape):
        lim = gain * jnp.sqrt(6.0 / (shape[0] + shape[1]))
        return jax.random.uniform(k, shape, jnp.float32, -lim, lim
                                  ).astype(jnp.bfloat16)
    loop_weight = xavier(keys[3], (F, F))
    evolve_loop_weight = xavier(keys[4], (F, F))
    skip_connect_weight = xavier(keys[5], (F, F))
    weight_neighbor = xavier(keys[6], (F, F))
    skip_connect_bias = jnp.zeros((F,), jnp.float32)

    # Random edge list -> dense adjacency / relation-count matrices and norms.
    src = jax.random.randint(keys[7], (E,), 0, N)
    dst = jax.random.randint(keys[8], (E,), 0, N)
    etype = jax.random.randint(keys[9], (E,), 0, R)
    A_f32 = jnp.zeros((N, N), jnp.float32).at[dst, src].add(1.0)
    T_f32 = jnp.zeros((N, R), jnp.float32).at[dst, etype].add(1.0)
    in_deg = A_f32.sum(axis=1, keepdims=True)
    mask = (in_deg > 0).astype(jnp.float32)                    # (N, 1)
    norm = jnp.where(in_deg > 0, 1.0 / jnp.maximum(in_deg, 1.0), 0.0)
    A_i8 = A_f32.astype(jnp.int8)       # edge counts << 127 -> exact in int8
    T_bf16 = T_f32.astype(jnp.bfloat16)  # tiny stream; counts exact in bf16

    # --- skip_connect branch (prev_h provided) ---
    out_skip = union_rgcn_forward_skip(
        h, prev_h, A_i8, T_bf16, mask, norm, rel_emb,
        loop_weight, evolve_loop_weight, skip_connect_weight,
        skip_connect_bias, weight_neighbor, tile_n=TILE_N, tile_k=TILE_K)
    out_skip = jax.block_until_ready(out_skip)
    ref_skip = _ref_forward(h, prev_h, A_f32, T_f32, mask, norm, rel_emb,
                            loop_weight, evolve_loop_weight,
                            skip_connect_weight, skip_connect_bias,
                            weight_neighbor)
    assert jnp.allclose(out_skip, ref_skip, atol=1e-2, rtol=1e-2), \
        "skip-branch mismatch"

    # --- base branch (prev_h empty) ---
    out_base = union_rgcn_forward_base(
        h, A_i8, T_bf16, mask, norm, rel_emb,
        loop_weight, evolve_loop_weight, weight_neighbor,
        tile_n=TILE_N, tile_k=TILE_K)
    out_base = jax.block_until_ready(out_base)
    ref_base = _ref_forward(h, None, A_f32, T_f32, mask, norm, rel_emb,
                            loop_weight, evolve_loop_weight,
                            None, skip_connect_bias, weight_neighbor)
    assert jnp.allclose(out_base, ref_base, atol=1e-2, rtol=1e-2), \
        "base-branch mismatch"

    print("KERNEL_OK")
</pallas_src>

<mosaic_0001>
module attributes {stable_mosaic.version = 11 : i64} {
  func.func @_union_rgcn_skip_kernel(%arg0: i32, %arg1: i32, %arg2: memref<128x128xbf16, #tpu.memory_space<vmem>>, %arg3: memref<128x128xbf16, #tpu.memory_space<vmem>>, %arg4: memref<128x256xi8, #tpu.memory_space<vmem>>, %arg5: memref<128x16xbf16, #tpu.memory_space<vmem>>, %arg6: memref<128x1xf32, #tpu.memory_space<vmem>>, %arg7: memref<128x1xf32, #tpu.memory_space<vmem>>, %arg8: memref<256x128xbf16, #tpu.memory_space<vmem>>, %arg9: memref<16x128xbf16, #tpu.memory_space<vmem>>, %arg10: memref<128x256xbf16, #tpu.memory_space<vmem>>, %arg11: memref<128x128xbf16, #tpu.memory_space<vmem>>, %arg12: memref<1x128xf32, #tpu.memory_space<vmem>>, %arg13: memref<128x128xf32, #tpu.memory_space<vmem>>, %arg14: memref<128x128xf32, #tpu.memory_space<vmem>>) attributes {dimension_semantics = [#tpu.dimension_semantics<parallel>, #tpu.dimension_semantics<arbitrary>], iteration_bounds = array<i64: 4, 2>, scalar_prefetch = 0 : i64, scratch_operands = 1 : i64, tpu.core_type = #tpu.core_type<tc>, window_params = [{transform_indices = @transform_0, window_bounds = array<i64: 128, 128>}, {transform_indices = @transform_1, window_bounds = array<i64: 128, 128>}, {transform_indices = @transform_2, window_bounds = array<i64: 128, 256>}, {transform_indices = @transform_3, window_bounds = array<i64: 128, 16>}, {transform_indices = @transform_4, window_bounds = array<i64: 128, 1>}, {transform_indices = @transform_5, window_bounds = array<i64: 128, 1>}, {transform_indices = @transform_6, window_bounds = array<i64: 256, 128>}, {pipeline_mode = #tpu.pipeline_mode<synchronous>, transform_indices = @transform_7, window_bounds = array<i64: 16, 128>}, {pipeline_mode = #tpu.pipeline_mode<synchronous>, transform_indices = @transform_8, window_bounds = array<i64: 128, 256>}, {pipeline_mode = #tpu.pipeline_mode<synchronous>, transform_indices = @transform_9, window_bounds = array<i64: 128, 128>}, {pipeline_mode = #tpu.pipeline_mode<synchronous>, transform_indices = @transform_10, window_bounds = array<i64: 1, 128>}, {transform_indices = @transform_11, window_bounds = array<i64: 128, 128>}]} {
    %c0_i32 = arith.constant 0 : i32
    %0 = arith.cmpi eq, %arg1, %c0_i32 : i32
    %1 = arith.extui %0 : i1 to i32
    %c0_i32_0 = arith.constant 0 : i32
    %2 = arith.cmpi ne, %1, %c0_i32_0 : i32
    scf.if %2 {
      %c0_9 = arith.constant 0 : index
      %c0_10 = arith.constant 0 : index
      %14 = vector.load %arg5[%c0_9, %c0_10] : memref<128x16xbf16, #tpu.memory_space<vmem>>, vector<128x16xbf16>
      %c0_11 = arith.constant 0 : index
      %c0_12 = arith.constant 0 : index
      %15 = vector.load %arg9[%c0_11, %c0_12] : memref<16x128xbf16, #tpu.memory_space<vmem>>, vector<16x128xbf16>
      %cst_13 = arith.constant dense<0.000000e+00> : vector<128x128xf32>
      %16 = tpu.matmul %14, %15, %cst_13 {dimension_numbers = #tpu.dot_dimension_numbers<[1], [0], [0], [1], [0, 0, 1, 1], [], []>} : vector<128x16xbf16>, vector<16x128xbf16>, vector<128x128xf32> -> vector<128x128xf32>
      %c0_14 = arith.constant 0 : index
      %c0_15 = arith.constant 0 : index
      %17 = vector.load %arg14[%c0_14, %c0_15] : memref<128x128xf32, #tpu.memory_space<vmem>>, vector<128x128xf32>
      tpu.vector_store %arg14[%c0_14, %c0_15], %16 {strides = array<i32>} : memref<128x128xf32, #tpu.memory_space<vmem>>, vector<128x128xf32>,
    } else {
    }
    %c0 = arith.constant 0 : index
    %c0_1 = arith.constant 0 : index
    %3 = vector.load %arg4[%c0, %c0_1] : memref<128x256xi8, #tpu.memory_space<vmem>>, vector<128x256xi8>
    %4 = arith.sitofp %3 : vector<128x256xi8> to vector<128x256xf32>
    %5 = arith.truncf %4 : vector<128x256xf32> to vector<128x256xbf16>
    %c0_2 = arith.constant 0 : index
    %c0_3 = arith.constant 0 : index
    %6 = vector.load %arg14[%c0_2, %c0_3] : memref<128x128xf32, #tpu.memory_space<vmem>>, vector<128x128xf32>
    %c0_4 = arith.constant 0 : index
    %c0_5 = arith.constant 0 : index
    %7 = vector.load %arg8[%c0_4, %c0_5] : memref<256x128xbf16, #tpu.memory_space<vmem>>, vector<256x128xbf16>
    %cst = arith.constant dense<0.000000e+00> : vector<128x128xf32>
    %8 = tpu.matmul %5, %7, %cst {dimension_numbers = #tpu.dot_dimension_numbers<[1], [0], [0], [1], [0, 0, 1, 1], [], []>} : vector<128x256xbf16>, vector<256x128xbf16>, vector<128x128xf32> -> vector<128x128xf32>
    %9 = arith.addf %6, %8 : vector<128x128xf32>
    %c0_6 = arith.constant 0 : index
    %c0_7 = arith.constant 0 : index
    %10 = vector.load %arg14[%c0_6, %c0_7] : memref<128x128xf32, #tpu.memory_space<vmem>>, vector<128x128xf32>
    tpu.vector_store %arg14[%c0_6, %c0_7], %9 {strides = array<i32>} : memref<128x128xf32, #tpu.memory_space<vmem>>, vector<128x128xf32>,
    %c1_i32 = arith.constant 1 : i32
    %11 = arith.cmpi eq, %arg1, %c1_i32 : i32
    %12 = arith.extui %11 : i1 to i32
    %c0_i32_8 = arith.constant 0 : i32
    %13 = arith.cmpi ne, %12, %c0_i32_8 : i32
    scf.if %13 {
      %c0_9 = arith.constant 0 : index
      %c0_10 = arith.constant 0 : index
      %14 = vector.load %arg2[%c0_9, %c0_10] : memref<128x128xbf16, #tpu.memory_space<vmem>>, vector<128x128xbf16>
      %c0_11 = arith.constant 0 : index
      %c0_12 = arith.constant 0 : index
      %15 = vector.load %arg3[%c0_11, %c0_12] : memref<128x128xbf16, #tpu.memory_space<vmem>>, vector<128x128xbf16>
      %c0_13 = arith.constant 0 : index
      %c0_14 = arith.constant 0 : index
      %16 = vector.load %arg10[%c0_13, %c0_14] : memref<128x256xbf16, #tpu.memory_space<vmem>>, vector<128x256xbf16>
      %cst_15 = arith.constant dense<0.000000e+00> : vector<128x256xf32>
      %17 = tpu.matmul %14, %16, %cst_15 {dimension_numbers = #tpu.dot_dimension_numbers<[1], [0], [0], [1], [0, 0, 1, 1], [], []>} : vector<128x128xbf16>, vector<128x256xbf16>, vector<128x256xf32> -> vector<128x256xf32>
      %18 = vector.extract_strided_slice %17 {offsets = [0, 0], sizes = [128, 128], strides = [1, 1]} : vector<128x256xf32> to vector<128x128xf32>
      %19 = vector.extract_strided_slice %17 {offsets = [0, 128], sizes = [128, 128], strides = [1, 1]} : vector<128x256xf32> to vector<128x128xf32>
      %c0_16 = arith.constant 0 : index
      %c0_17 = arith.constant 0 : index
      %20 = vector.load %arg6[%c0_16, %c0_17] : memref<128x1xf32, #tpu.memory_space<vmem>>, vector<128x1xf32>
      %21 = arith.subf %18, %19 : vector<128x128xf32>
      %22 = vector.broadcast %20 : vector<128x1xf32> to vector<128x128xf32>
      %23 = arith.mulf %22, %21 : vector<128x128xf32>
      %24 = arith.addf %19, %23 : vector<128x128xf32>
      %c0_18 = arith.constant 0 : index
      %c0_19 = arith.constant 0 : index
      %25 = vector.load %arg11[%c0_18, %c0_19] : memref<128x128xbf16, #tpu.memory_space<vmem>>, vector<128x128xbf16>
      %cst_20 = arith.constant dense<0.000000e+00> : vector<128x128xf32>
      %26 = tpu.matmul %15, %25, %cst_20 {dimension_numbers = #tpu.dot_dimension_numbers<[1], [0], [0], [1], [0, 0, 1, 1], [], []>} : vector<128x128xbf16>, vector<128x128xbf16>, vector<128x128xf32> -> vector<128x128xf32>
      %c0_21 = arith.constant 0 : index
      %c0_22 = arith.constant 0 : index
      %27 = vector.load %arg12[%c0_21, %c0_22] : memref<1x128xf32, #tpu.memory_space<vmem>>, vector<1x128xf32>
      %28 = vector.broadcast %27 : vector<1x128xf32> to vector<128x128xf32>
      %29 = arith.addf %26, %28 : vector<128x128xf32>
      %30 = arith.negf %29 : vector<128x128xf32>
      %31 = math.exp %30 : vector<128x128xf32>
      %cst_23 = arith.constant 1.000000e+00 : f32
      %32 = vector.broadcast %cst_23 : f32 to vector<128x128xf32>
      %33 = arith.addf %32, %31 : vector<128x128xf32>
      %34 = arith.divf %32, %33 : vector<128x128xf32>
      %c0_24 = arith.constant 0 : index
      %c0_25 = arith.constant 0 : index
      %35 = vector.load %arg14[%c0_24, %c0_25] : memref<128x128xf32, #tpu.memory_space<vmem>>, vector<128x128xf32>
      %c0_26 = arith.constant 0 : index
      %c0_27 = arith.constant 0 : index
      %36 = vector.load %arg7[%c0_26, %c0_27] : memref<128x1xf32, #tpu.memory_space<vmem>>, vector<128x1xf32>
      %37 = vector.broadcast %36 : vector<128x1xf32> to vector<128x128xf32>
      %38 = arith.mulf %35, %37 : vector<128x128xf32>
      %39 = arith.extf %15 : vector<128x128xbf16> to vector<128x128xf32>
      %40 = arith.addf %38, %24 : vector<128x128xf32>
      %41 = arith.subf %40, %39 : vector<128x128xf32>
      %42 = arith.mulf %34, %41 : vector<128x128xf32>
      %43 = arith.addf %39, %42 : vector<128x128xf32>
      %cst_28 = arith.constant 0.000000e+00 : f32
      %44 = vector.broadcast %cst_28 : f32 to vector<128x128xf32>
      %45 = arith.maximumf %43, %44 : vector<128x128xf32>
      %c0_29 = arith.constant 0 : index
      %c0_30 = arith.constant 0 : index
      %46 = vector.load %arg13[%c0_29, %c0_30] : memref<128x128xf32, #tpu.memory_space<vmem>>, vector<128x128xf32>
      tpu.vector_store %arg13[%c0_29, %c0_30], %45 {strides = array<i32>} : memref<128x128xf32, #tpu.memory_space<vmem>>, vector<128x128xf32>,
    } else {
    }
    return
  }
  func.func @transform_0(%arg0: i32, %arg1: i32) -> (i32, i32) {
    %c0_i32 = arith.constant 0 : i32
    %c0_i32_0 = arith.constant 0 : i32
    return %arg0, %c0_i32 : i32, i32
  }
  func.func @transform_1(%arg0: i32, %arg1: i32) -> (i32, i32) {
    %c0_i32 = arith.constant 0 : i32
    %c0_i32_0 = arith.constant 0 : i32
    return %arg0, %c0_i32 : i32, i32
  }
  func.func @transform_2(%arg0: i32, %arg1: i32) -> (i32, i32) {
    %c0_i32 = arith.constant 0 : i32
    return %arg0, %arg1 : i32, i32
  }
  func.func @transform_3(%arg0: i32, %arg1: i32) -> (i32, i32) {
    %c0_i32 = arith.constant 0 : i32
    %c0_i32_0 = arith.constant 0 : i32
    return %arg0, %c0_i32 : i32, i32
  }
  func.func @transform_4(%arg0: i32, %arg1: i32) -> (i32, i32) {
    %c0_i32 = arith.constant 0 : i32
    %c0_i32_0 = arith.constant 0 : i32
    return %arg0, %c0_i32 : i32, i32
  }
  func.func @transform_5(%arg0: i32, %arg1: i32) -> (i32, i32) {
    %c0_i32 = arith.constant 0 : i32
    %c0_i32_0 = arith.constant 0 : i32
    return %arg0, %c0_i32 : i32, i32
  }
  func.func @transform_6(%arg0: i32, %arg1: i32) -> (i32, i32) {
    %c0_i32 = arith.constant 0 : i32
    %c0_i32_0 = arith.constant 0 : i32
    return %arg1, %c0_i32 : i32, i32
  }
  func.func @transform_7(%arg0: i32, %arg1: i32) -> (i32, i32) {
    %c0_i32 = arith.constant 0 : i32
    %c0_i32_0 = arith.constant 0 : i32
    %c0_i32_1 = arith.constant 0 : i32
    return %c0_i32, %c0_i32_0 : i32, i32
  }
  func.func @transform_8(%arg0: i32, %arg1: i32) -> (i32, i32) {
    %c0_i32 = arith.constant 0 : i32
    %c0_i32_0 = arith.constant 0 : i32
    %c0_i32_1 = arith.constant 0 : i32
    return %c0_i32, %c0_i32_0 : i32, i32
  }
  func.func @transform_9(%arg0: i32, %arg1: i32) -> (i32, i32) {
    %c0_i32 = arith.constant 0 : i32
    %c0_i32_0 = arith.constant 0 : i32
    %c0_i32_1 = arith.constant 0 : i32
    return %c0_i32, %c0_i32_0 : i32, i32
  }
  func.func @transform_10(%arg0: i32, %arg1: i32) -> (i32, i32) {
    %c0_i32 = arith.constant 0 : i32
    %c0_i32_0 = arith.constant 0 : i32
    %c0_i32_1 = arith.constant 0 : i32
    return %c0_i32, %c0_i32_0 : i32, i32
  }
  func.func @transform_11(%arg0: i32, %arg1: i32) -> (i32, i32) {
    %c0_i32 = arith.constant 0 : i32
    %c0_i32_0 = arith.constant 0 : i32
    return %arg0, %c0_i32 : i32, i32
  }
}

</mosaic_0001>

<llo_original>
// kernel: tpu_custom_call.1
$region0: #{tpu_custom_call.1}
  #allocation0 [shape = 'u32[]', space=smem, size = 0x4, offset = 0x4, fixed_abs, tag = 'smem constant byte address 0x4 - core index']
  #allocation1 [shape = 'u32[144,128]{1,0:T(1,128)}', space=vmem, size = 0x12000, scoped, tag = 'internal scratch']
  #allocation2 [shape = 'f32[128,128]{1,0:T(8,128)}', space=vmem, size = 0x10000, scoped, tag = 'scratch operand']
  %s0 = inlined_call_operand.vmem [shape: bf16[512,128], index: 0, kind: input, shape index: {}]
  %s1 = inlined_call_operand.vmem [shape: bf16[512,128], index: 1, kind: input, shape index: {}]
  %s2 = inlined_call_operand.vmem [shape: s8[512,512], index: 2, kind: input, shape index: {}]
  %s3 = inlined_call_operand.vmem [shape: bf16[512,16], index: 3, kind: input, shape index: {}]
  %s4 = inlined_call_operand.vmem [shape: f32[512,1], index: 4, kind: input, shape index: {}]
  %s5 = inlined_call_operand.vmem [shape: f32[512,1], index: 5, kind: input, shape index: {}]
  %s6 = inlined_call_operand.vmem [shape: bf16[512,128], index: 6, kind: input, shape index: {}]
  %s7 = inlined_call_operand.hbm [shape: bf16[16,128], index: 7, kind: input, shape index: {}]
  %s8 = inlined_call_operand.hbm [shape: bf16[128,256], index: 8, kind: input, shape index: {}]
  %s9 = inlined_call_operand.vmem [shape: bf16[128,128], index: 9, kind: input, shape index: {}]
  %s10 = inlined_call_operand.vmem [shape: f32[1,128], index: 10, kind: input, shape index: {}]
  %s11 = inlined_call_operand.hbm [shape: f32[512,128], index: 11, kind: output, shape index: {}]
  %s12 = sld [smem:[#allocation0]]
  $region116: #{tpu_custom_call.1} parent=0
    _
  %s14 = ssub.s32 1, %s12
  %s15 = scalar_select 0, %s14, %s12
  $region1: #{tpu_custom_call.1} parent=0
    #allocation3 [shape = 'u8[65536]{0}', space=vmem, size = 0x10000, scoped, tag = 'input window, operand 2']
    #allocation4 [shape = 'u8[4096]{0}', space=vmem, size = 0x1000, scoped, tag = 'input window, operand 7, single buffered']
    #allocation5 [shape = 's32[2]{0}', space=sflag, size = 0x8, scoped, tag = 'scoped memory for tpu_custom_call.1']
    #allocation6 [shape = 's32[2]{0}', space=sflag, size = 0x8, scoped, tag = 'scoped memory for tpu_custom_call.1']
    #allocation7 [shape = 'u8[65536]{0}', space=vmem, size = 0x10000, scoped, tag = 'input window, operand 8, single buffered']
    #allocation8 [shape = 's32[1]{0}', space=sflag, size = 0x4, scoped, tag = 'scoped memory for tpu_custom_call.1']
    #allocation9 [shape = 'u8[131072]{0}', space=vmem, size = 0x20000, scoped, tag = 'output window, operand 0']
    %16 = vsyncpa [#allocation5], 0
    %17 = vsyncpa [#allocation8], 0
    %18 = vsyncpa [#allocation6], 0
    %s19 = scalar_lea.sflag [#allocation6], 1
    %20 = vsyncpa %s19, 0
    loop: start=0, step=1, limit=10
    $region2: #{tpu_custom_call.1} parent=1 // loop_pre_header
      _
    $region3: #{tpu_custom_call.1} parent=1 // loop_header
      %s22 = sphi 0, %s26
      %p23 = scmp.ge.s32.totalorder %s22, 10
      %s29 = sphi 0, %s41
      %s30 = sphi 0, %s37
      %s31 = sphi 0, %s29
      %s32 = sphi 0, %s30
      %s33 = sphi 0, %s31
      %s34 = sphi 0, %s32
      %s44 = sphi 0, %s46
      %s47 = sphi 0, %s44
      %s48 = sphi 0, %s47
      %s64 = sphi 0, %s48
      %s70 = sphi 0, %s72
      %s73 = sphi 0, %s70
      %s74 = sphi 0, %s73
      %s90 = sphi 0, %s74
      %s98 = sphi 0, %s100
      %s101 = sphi 0, %s98
      %s102 = sphi 0, %s101
      %s118 = sphi 0, %s102
      %s124 = sphi 0, %s126
      %s127 = sphi 0, %s124
      %s128 = sphi 0, %s127
      %s144 = sphi 0, %s128
      %s150 = sphi 0, %s152
      %s153 = sphi 0, %s150
      %s154 = sphi 0, %s153
      %s170 = sphi 0, %s154
      %s176 = sphi 0, %s178
      %s179 = sphi 0, %s176
      %s180 = sphi 0, %s179
      %s196 = sphi 0, %s180
      %s202 = sphi 0, %s204
      %s205 = sphi 0, %s202
      %s206 = sphi 0, %s205
      %s222 = sphi 0, %s206
      %s226 = sphi 0, %s226
      %s228 = sphi 0, %s226
      %s229 = sphi 0, %s228
      %s243 = sphi 0, %s229
      %s247 = sphi 0, %s247
      %s249 = sphi 0, %s247
      %s250 = sphi 0, %s249
      %s264 = sphi 0, %s250
      %s268 = sphi 0, %s268
      %s270 = sphi 0, %s268
      %s271 = sphi 0, %s270
      %s285 = sphi 0, %s271
      %s289 = sphi 0, %s289
      %s291 = sphi 0, %s289
      %s292 = sphi 0, %s291
      %s306 = sphi 0, %s292
      %s312 = sphi 0, %s314
      %s315 = sphi 0, %s312
      %s316 = sphi 0, %s315
      %s332 = sphi 0, %s316
    $region4: #{tpu_custom_call.1} parent=1 // loop_header_branch
      %25 = sbr.rel (%p23) target = $region8
    $region5: #{tpu_custom_call.1} parent=1 // loop_body
      %s27 = ssub.s32 %s22, 1
      %s28 = ssub.s32 %s22, 2
      %s35 = sadd.s32 1, %s30
      %p36 = scmp.ge.s32.totalorder %s35, 2
      %s37 = scalar_select %p36, 0, %s35
      %s38 = sadd.s32 1, %s29
      %s39 = scalar_select %p36, %s38, %s29
      %p40 = scmp.ge.s32.totalorder %s39, 4
      %s41 = scalar_select %p40, 0, %s39
      %s42 = ssub.s32 %s29, %s41
      %p43 = scmp.eq.s32.totalorder %s42, 0
      %s45 = sadd.s32 %s44, 1
      %s46 = scalar_select %p43, %s44, %s45
      %p49 = pneg %p43
      %p50 = scmp.eq.s32.totalorder %s22, 7
      %p51 = por %p49, %p50
      %p52 = scmp.ne.s32.totalorder %s44, %s47
      %p53 = scmp.eq.s32.totalorder %s22, 0
      %p54 = por %p52, %p53
      %p55 = scmp.ne.s32.totalorder %s44, %s47
      %p56 = scmp.eq.s32.totalorder %s27, 7
      %p57 = por %p55, %p56
      %p58 = scmp.ne.s32.totalorder %s47, %s48
      %p59 = scmp.eq.s32.totalorder %s27, 0
      %p60 = por %p58, %p59
      %p61 = scmp.ne.s32.totalorder %s47, %s48
      %p62 = scmp.eq.s32.totalorder %s28, 7
      %p63 = por %p61, %p62
      %p65 = scmp.ne.s32.totalorder %s48, %s64
      %p66 = scmp.eq.s32.totalorder %s28, 0
      %p67 = por %p65, %p66
      %s68 = ssub.s32 %s29, %s41
      %p69 = scmp.eq.s32.totalorder %s68, 0
      %s71 = sadd.s32 %s70, 1
      %s72 = scalar_select %p69, %s70, %s71
      %p75 = pneg %p69
      %p76 = scmp.eq.s32.totalorder %s22, 7
      %p77 = por %p75, %p76
      %p78 = scmp.ne.s32.totalorder %s70, %s73
      %p79 = scmp.eq.s32.totalorder %s22, 0
      %p80 = por %p78, %p79
      %p81 = scmp.ne.s32.totalorder %s70, %s73
      %p82 = scmp.eq.s32.totalorder %s27, 7
      %p83 = por %p81, %p82
      %p84 = scmp.ne.s32.totalorder %s73, %s74
      %p85 = scmp.eq.s32.totalorder %s27, 0
      %p86 = por %p84, %p85
      %p87 = scmp.ne.s32.totalorder %s73, %s74
      %p88 = scmp.eq.s32.totalorder %s28, 7
      %p89 = por %p87, %p88
      %p91 = scmp.ne.s32.totalorder %s74, %s90
      %p92 = scmp.eq.s32.totalorder %s28, 0
      %p93 = por %p91, %p92
      %s94 = ssub.s32 %s29, %s41
      %s95 = ssub.s32 %s30, %s37
      %s96 = sor.u32 %s94, %s95
      %p97 = scmp.eq.s32.totalorder %s96, 0
      %s99 = sadd.s32 %s98, 1
      %s100 = scalar_select %p97, %s98, %s99
      %p103 = pneg %p97
      %p104 = scmp.eq.s32.totalorder %s22, 7
      %p105 = por %p103, %p104
      %p106 = scmp.ne.s32.totalorder %s98, %s101
      %p107 = scmp.eq.s32.totalorder %s22, 0
      %p108 = por %p106, %p107
      %p109 = scmp.ne.s32.totalorder %s98, %s101
      %p110 = scmp.eq.s32.totalorder %s27, 7
      %p111 = por %p109, %p110
      %p112 = scmp.ne.s32.totalorder %s101, %s102
      %p113 = scmp.eq.s32.totalorder %s27, 0
      %p114 = por %p112, %p113
      %p115 = scmp.ne.s32.totalorder %s101, %s102
      %p116 = scmp.eq.s32.totalorder %s28, 7
      %p117 = por %p115, %p116
      %p119 = scmp.ne.s32.totalorder %s102, %s118
      %p120 = scmp.eq.s32.totalorder %s28, 0
      %p121 = por %p119, %p120
      %s122 = ssub.s32 %s29, %s41
      %p123 = scmp.eq.s32.totalorder %s122, 0
      %s125 = sadd.s32 %s124, 1
      %s126 = scalar_select %p123, %s124, %s125
      %p129 = pneg %p123
      %p130 = scmp.eq.s32.totalorder %s22, 7
      %p131 = por %p129, %p130
      %p132 = scmp.ne.s32.totalorder %s124, %s127
      %p133 = scmp.eq.s32.totalorder %s22, 0
      %p134 = por %p132, %p133
      %p135 = scmp.ne.s32.totalorder %s124, %s127
      %p136 = scmp.eq.s32.totalorder %s27, 7
      %p137 = por %p135, %p136
      %p138 = scmp.ne.s32.totalorder %s127, %s128
      %p139 = scmp.eq.s32.totalorder %s27, 0
      %p140 = por %p138, %p139
      %p141 = scmp.ne.s32.totalorder %s127, %s128
      %p142 = scmp.eq.s32.totalorder %s28, 7
      %p143 = por %p141, %p142
      %p145 = scmp.ne.s32.totalorder %s128, %s144
      %p146 = scmp.eq.s32.totalorder %s28, 0
      %p147 = por %p145, %p146
      %s148 = ssub.s32 %s29, %s41
      %p149 = scmp.eq.s32.totalorder %s148, 0
      %s151 = sadd.s32 %s150, 1
      %s152 = scalar_select %p149, %s150, %s151
      %p155 = pneg %p149
      %p156 = scmp.eq.s32.totalorder %s22, 7
      %p157 = por %p155, %p156
      %p158 = scmp.ne.s32.totalorder %s150, %s153
      %p159 = scmp.eq.s32.totalorder %s22, 0
      %p160 = por %p158, %p159
      %p161 = scmp.ne.s32.totalorder %s150, %s153
      %p162 = scmp.eq.s32.totalorder %s27, 7
      %p163 = por %p161, %p162
      %p164 = scmp.ne.s32.totalorder %s153, %s154
      %p165 = scmp.eq.s32.totalorder %s27, 0
      %p166 = por %p164, %p165
      %p167 = scmp.ne.s32.totalorder %s153, %s154
      %p168 = scmp.eq.s32.totalorder %s28, 7
      %p169 = por %p167, %p168
      %p171 = scmp.ne.s32.totalorder %s154, %s170
      %p172 = scmp.eq.s32.totalorder %s28, 0
      %p173 = por %p171, %p172
      %s174 = ssub.s32 %s29, %s41
      %p175 = scmp.eq.s32.totalorder %s174, 0
      %s177 = sadd.s32 %s176, 1
      %s178 = scalar_select %p175, %s176, %s177
      %p181 = pneg %p175
      %p182 = scmp.eq.s32.totalorder %s22, 7
      %p183 = por %p181, %p182
      %p184 = scmp.ne.s32.totalorder %s176, %s179
      %p185 = scmp.eq.s32.totalorder %s22, 0
      %p186 = por %p184, %p185
      %p187 = scmp.ne.s32.totalorder %s176, %s179
      %p188 = scmp.eq.s32.totalorder %s27, 7
      %p189 = por %p187, %p188
      %p190 = scmp.ne.s32.totalorder %s179, %s180
      %p191 = scmp.eq.s32.totalorder %s27, 0
      %p192 = por %p190, %p191
      %p193 = scmp.ne.s32.totalorder %s179, %s180
      %p194 = scmp.eq.s32.totalorder %s28, 7
      %p195 = por %p193, %p194
      %p197 = scmp.ne.s32.totalorder %s180, %s196
      %p198 = scmp.eq.s32.totalorder %s28, 0
      %p199 = por %p197, %p198
      %s200 = ssub.s32 %s30, %s37
      %p201 = scmp.eq.s32.totalorder %s200, 0
      %s203 = sadd.s32 %s202, 1
      %s204 = scalar_select %p201, %s202, %s203
      %p207 = pneg %p201
      %p208 = scmp.eq.s32.totalorder %s22, 7
      %p209 = por %p207, %p208
      %p210 = scmp.ne.s32.totalorder %s202, %s205
      %p211 = scmp.eq.s32.totalorder %s22, 0
      %p212 = por %p210, %p211
      %p213 = scmp.ne.s32.totalorder %s202, %s205
      %p214 = scmp.eq.s32.totalorder %s27, 7
      %p215 = por %p213, %p214
      %p216 = scmp.ne.s32.totalorder %s205, %s206
      %p217 = scmp.eq.s32.totalorder %s27, 0
      %p218 = por %p216, %p217
      %p219 = scmp.ne.s32.totalorder %s205, %s206
      %p220 = scmp.eq.s32.totalorder %s28, 7
      %p221 = por %p219, %p220
      %p223 = scmp.ne.s32.totalorder %s206, %s222
      %p224 = scmp.eq.s32.totalorder %s28, 0
      %p225 = por %p223, %p224
      %s227 = sadd.s32 %s226, 1
      %p230 = scmp.eq.s32.totalorder %s22, 7
      %p231 = scmp.ne.s32.totalorder %s226, %s228
      %p232 = scmp.eq.s32.totalorder %s22, 0
      %p233 = por %p231, %p232
      %p234 = scmp.ne.s32.totalorder %s226, %s228
      %p235 = scmp.eq.s32.totalorder %s27, 7
      %p236 = por %p234, %p235
      %p237 = scmp.ne.s32.totalorder %s228, %s229
      %p238 = scmp.eq.s32.totalorder %s27, 0
      %p239 = por %p237, %p238
      %p240 = scmp.ne.s32.totalorder %s228, %s229
      %p241 = scmp.eq.s32.totalorder %s28, 7
      %p242 = por %p240, %p241
      %p244 = scmp.ne.s32.totalorder %s229, %s243
      %p245 = scmp.eq.s32.totalorder %s28, 0
      %p246 = por %p244, %p245
      %s248 = sadd.s32 %s247, 1
      %p251 = scmp.eq.s32.totalorder %s22, 7
      %p252 = scmp.ne.s32.totalorder %s247, %s249
      %p253 = scmp.eq.s32.totalorder %s22, 0
      %p254 = por %p252, %p253
      %p255 = scmp.ne.s32.totalorder %s247, %s249
      %p256 = scmp.eq.s32.totalorder %s27, 7
      %p257 = por %p255, %p256
      %p258 = scmp.ne.s32.totalorder %s249, %s250
      %p259 = scmp.eq.s32.totalorder %s27, 0
      %p260 = por %p258, %p259
      %p261 = scmp.ne.s32.totalorder %s249, %s250
      %p262 = scmp.eq.s32.totalorder %s28, 7
      %p263 = por %p261, %p262
      %p265 = scmp.ne.s32.totalorder %s250, %s264
      %p266 = scmp.eq.s32.totalorder %s28, 0
      %p267 = por %p265, %p266
      %s269 = sadd.s32 %s268, 1
      %p272 = scmp.eq.s32.totalorder %s22, 7
      %p273 = scmp.ne.s32.totalorder %s268, %s270
      %p274 = scmp.eq.s32.totalorder %s22, 0
      %p275 = por %p273, %p274
      %p276 = scmp.ne.s32.totalorder %s268, %s270
      %p277 = scmp.eq.s32.totalorder %s27, 7
      %p278 = por %p276, %p277
      %p279 = scmp.ne.s32.totalorder %s270, %s271
      %p280 = scmp.eq.s32.totalorder %s27, 0
      %p281 = por %p279, %p280
      %p282 = scmp.ne.s32.totalorder %s270, %s271
      %p283 = scmp.eq.s32.totalorder %s28, 7
      %p284 = por %p282, %p283
      %p286 = scmp.ne.s32.totalorder %s271, %s285
      %p287 = scmp.eq.s32.totalorder %s28, 0
      %p288 = por %p286, %p287
      %s290 = sadd.s32 %s289, 1
      %p293 = scmp.eq.s32.totalorder %s22, 7
      %p294 = scmp.ne.s32.totalorder %s289, %s291
      %p295 = scmp.eq.s32.totalorder %s22, 0
      %p296 = por %p294, %p295
      %p297 = scmp.ne.s32.totalorder %s289, %s291
      %p298 = scmp.eq.s32.totalorder %s27, 7
      %p299 = por %p297, %p298
      %p300 = scmp.ne.s32.totalorder %s291, %s292
      %p301 = scmp.eq.s32.totalorder %s27, 0
      %p302 = por %p300, %p301
      %p303 = scmp.ne.s32.totalorder %s291, %s292
      %p304 = scmp.eq.s32.totalorder %s28, 7
      %p305 = por %p303, %p304
      %p307 = scmp.ne.s32.totalorder %s292, %s306
      %p308 = scmp.eq.s32.totalorder %s28, 0
      %p309 = por %p307, %p308
      %s310 = ssub.s32 %s29, %s41
      %p311 = scmp.eq.s32.totalorder %s310, 0
      %s313 = sadd.s32 %s312, 1
      %s314 = scalar_select %p311, %s312, %s313
      %p317 = pneg %p311
      %p318 = scmp.eq.s32.totalorder %s22, 7
      %p319 = por %p317, %p318
      %p320 = scmp.ne.s32.totalorder %s312, %s315
      %p321 = scmp.eq.s32.totalorder %s22, 0
      %p322 = por %p320, %p321
      %p323 = scmp.ne.s32.totalorder %s312, %s315
      %p324 = scmp.eq.s32.totalorder %s27, 7
      %p325 = por %p323, %p324
      %p326 = scmp.ne.s32.totalorder %s315, %s316
      %p327 = scmp.eq.s32.totalorder %s27, 0
      %p328 = por %p326, %p327
      %p329 = scmp.ne.s32.totalorder %s315, %s316
      %p330 = scmp.eq.s32.totalorder %s28, 7
      %p331 = por %p329, %p330
      %p333 = scmp.ne.s32.totalorder %s316, %s332
      %p334 = scmp.eq.s32.totalorder %s28, 0
      %p335 = por %p333, %p334
      %p336 = scmp.le.s32.totalorder 1, %s22
      %p337 = scmp.lt.s32.totalorder %s22, 9
      %p338 = pnand %p336, %p337
      %p339 = pneg %p338
      // Predicated region
      $region9: #{tpu_custom_call.1} parent=5 // pred_check
        _
      $region10: #{tpu_custom_call.1} parent=5 // pred_check_branch
        %341 = sbr.rel (%p338) target = $region12
      $region11: #{tpu_custom_call.1} parent=5 // pred_region
        %s342 = ssub.s32 %s22, 1
        // Predicated region
        $region13: #{tpu_custom_call.1} parent=11 // pred_check
          %p343 = pneg %p239
        $region14: #{tpu_custom_call.1} parent=11 // pred_check_branch
          %345 = sbr.rel (%p343) target = $region16
        $region15: #{tpu_custom_call.1} parent=11 // pred_region
          %s347 = ssub.s32 128, 128
          %348 = vsyncadd [#allocation5], %s347
          %s349 = sshll.u32 [#allocation4], 4
          %s350 = int_to_ptr.vmem [resolvable:$true] %s349
          %355 = dma.hbm_to_vmem [thread:$0]  %s7, 128, %s350, [#allocation5], 64, 64, 4
        $region16: #{tpu_custom_call.1} parent=11 // pred_fallthru
          _
        // Predicated region
        $region17: #{tpu_custom_call.1} parent=11 // pred_check
          %p356 = pneg %p260
        $region18: #{tpu_custom_call.1} parent=11 // pred_check_branch
          %358 = sbr.rel (%p356) target = $region20
        $region19: #{tpu_custom_call.1} parent=11 // pred_region
          %s360 = ssub.s32 2048, 2048
          %361 = vsyncadd [#allocation8], %s360
          %s362 = sshll.u32 [#allocation7], 4
          %s363 = int_to_ptr.vmem [resolvable:$true] %s362
          %368 = dma.hbm_to_vmem [thread:$0]  %s8, 2048, %s363, [#allocation8], 128, 128, 8
        $region20: #{tpu_custom_call.1} parent=11 // pred_fallthru
          _
        // Predicated region
        $region21: #{tpu_custom_call.1} parent=11 // pred_check
          %p369 = pneg %p281
        $region22: #{tpu_custom_call.1} parent=11 // pred_check_branch
          %371 = sbr.rel (%p369) target = $region24
        $region23: #{tpu_custom_call.1} parent=11 // pred_region
          _
        $region24: #{tpu_custom_call.1} parent=11 // pred_fallthru
          _
        // Predicated region
        $region25: #{tpu_custom_call.1} parent=11 // pred_check
          %p372 = pneg %p302
        $region26: #{tpu_custom_call.1} parent=11 // pred_check_branch
          %374 = sbr.rel (%p372) target = $region28
        $region27: #{tpu_custom_call.1} parent=11 // pred_region
          _
        $region28: #{tpu_custom_call.1} parent=11 // pred_fallthru
          _
      $region12: #{tpu_custom_call.1} parent=5 // pred_fallthru
        _
      %p375 = scmp.lt.s32.totalorder %s22, 8
      // Predicated region
      $region29: #{tpu_custom_call.1} parent=5 // pred_check
        %p376 = pneg %p375
      $region30: #{tpu_custom_call.1} parent=5 // pred_check_branch
        %378 = sbr.rel (%p376) target = $region32
      $region31: #{tpu_custom_call.1} parent=5 // pred_region
        // Predicated region
        $region33: #{tpu_custom_call.1} parent=31 // pred_check
          %p379 = pneg %p54
        $region34: #{tpu_custom_call.1} parent=31 // pred_check_branch
          %381 = sbr.rel (%p379) target = $region36
        $region35: #{tpu_custom_call.1} parent=31 // pred_region
          %s382 = smul.u32 16, %s29
          %p383 = scmp.lt.s32.totalorder %s382, 63
          %s384 = scalar_select %p383, %s382, 63
          %s385 = smul.addr %s384, 4
          %s386 = scalar_lea.vmem %s0, %s385
          %s387 = smul.u32 16, %s29
        $region36: #{tpu_custom_call.1} parent=31 // pred_fallthru
          _
        // Predicated region
        $region37: #{tpu_custom_call.1} parent=31 // pred_check
          %p388 = pneg %p80
        $region38: #{tpu_custom_call.1} parent=31 // pred_check_branch
          %390 = sbr.rel (%p388) target = $region40
        $region39: #{tpu_custom_call.1} parent=31 // pred_region
          %s391 = smul.u32 16, %s29
          %p392 = scmp.lt.s32.totalorder %s391, 63
          %s393 = scalar_select %p392, %s391, 63
          %s394 = smul.addr %s393, 4
          %s395 = scalar_lea.vmem %s1, %s394
          %s396 = smul.u32 16, %s29
        $region40: #{tpu_custom_call.1} parent=31 // pred_fallthru
          _
        // Predicated region
        $region41: #{tpu_custom_call.1} parent=31 // pred_check
          %p397 = pneg %p108
        $region42: #{tpu_custom_call.1} parent=31 // pred_check_branch
          %399 = sbr.rel (%p397) target = $region44
        $region43: #{tpu_custom_call.1} parent=31 // pred_region
          %s400 = sand.u32 %s98, 1
          %s401 = sand.u32 %s98, 1
          %s402 = smul.addr %s401, 64
          %s403 = scalar_lea.vmem [#allocation3], %s402
          %s404 = smul.u32 4, %s29
          %s405 = smul.u32 2, %s30
          %s406 = smul.addr %s404, 4
          %s407 = sadd.s32 %s405, %s406
          %s408 = smul.addr %s407, 8
          %s409 = scalar_lea.vmem %s2, %s408
          // Predicated region
          $region45: #{tpu_custom_call.1} parent=43 // pred_check
            _
          $region46: #{tpu_custom_call.1} parent=43 // pred_check_branch
            %411 = sbr.rel (0) target = $region48
          $region47: #{tpu_custom_call.1} parent=43 // pred_region
            // Predicated region
            $region49: #{tpu_custom_call.1} parent=47 // pred_check
              _
            $region50: #{tpu_custom_call.1} parent=47 // pred_check_branch
              %413 = sbr.rel (0) target = $region52
            $region51: #{tpu_custom_call.1} parent=47 // pred_region
              loop: start=0, step=1, limit=1
              $region53: #{tpu_custom_call.1} parent=51 // loop_pre_header
                _
              $region54: #{tpu_custom_call.1} parent=51 // loop_header
                %s415 = sphi 0, %s419
                %p416 = scmp.ge.s32.totalorder %s415, 1
                %s420 = sphi %s409, %s409
                %s421 = sphi %s403, %s403
              $region55: #{tpu_custom_call.1} parent=51 // loop_header_branch
                %418 = sbr.rel (%p416) target = $region59
              $region56: #{tpu_custom_call.1} parent=51 // loop_body
                %v422 = vld [vmem:[%s420] sm:$0xff]
                %423 = vst [vmem:[%s421] sm:$0xff] %v422
                %v424 = vld [vmem:[%s420 + $0x8] sm:$0xff]
                %425 = vst [vmem:[%s421 + $0x8] sm:$0xff] %v424
                %v426 = vld [vmem:[%s420 + $0x20] sm:$0xff]
                %427 = vst [vmem:[%s421 + $0x10] sm:$0xff] %v426
                %v428 = vld [vmem:[%s420 + $0x28] sm:$0xff]
                %429 = vst [vmem:[%s421 + $0x18] sm:$0xff] %v428
                %v430 = vld [vmem:[%s420 + $0x40] sm:$0xff]
                %431 = vst [vmem:[%s421 + $0x20] sm:$0xff] %v430
                %v432 = vld [vmem:[%s420 + $0x48] sm:$0xff]
                %433 = vst [vmem:[%s421 + $0x28] sm:$0xff] %v432
                %v434 = vld [vmem:[%s420 + $0x60] sm:$0xff]
                %435 = vst [vmem:[%s421 + $0x30] sm:$0xff] %v434
                %v436 = vld [vmem:[%s420 + $0x68] sm:$0xff]
                %437 = vst [vmem:[%s421 + $0x38] sm:$0xff] %v436
              $region57: #{tpu_custom_call.1} parent=51 // loop_footer
                %s419 = sadd.s32 1, %s415
              $region58: #{tpu_custom_call.1} parent=51 // loop_footer_branch
                %414 = sbr.rel target = $region54
              $region59: #{tpu_custom_call.1} parent=51 // loop_exit
                _
            $region52: #{tpu_custom_call.1} parent=47 // pred_fallthru
              _
            // Predicated region
            $region60: #{tpu_custom_call.1} parent=47 // pred_check
              _
            $region61: #{tpu_custom_call.1} parent=47 // pred_check_branch
              %439 = sbr.rel target = $region63
            $region62: #{tpu_custom_call.1} parent=47 // pred_region
              _
            $region63: #{tpu_custom_call.1} parent=47 // pred_fallthru
              _
          $region48: #{tpu_custom_call.1} parent=43 // pred_fallthru
            _
          %440 = vnop
        $region44: #{tpu_custom_call.1} parent=31 // pred_fallthru
          _
        // Predicated region
        $region64: #{tpu_custom_call.1} parent=31 // pred_check
          %p441 = pneg %p134
        $region65: #{tpu_custom_call.1} parent=31 // pred_check_branch
          %443 = sbr.rel (%p441) target = $region67
        $region66: #{tpu_custom_call.1} parent=31 // pred_region
          %s444 = smul.u32 16, %s29
          %p445 = scmp.lt.s32.totalorder %s444, 63
          %s446 = scalar_select %p445, %s444, 63
          %s447 = smul.addr %s446, 4
          %s448 = scalar_lea.vmem %s3, %s447
          %s449 = smul.u32 16, %s29
        $region67: #{tpu_custom_call.1} parent=31 // pred_fallthru
          _
        // Predicated region
        $region68: #{tpu_custom_call.1} parent=31 // pred_check
          %p450 = pneg %p160
        $region69: #{tpu_custom_call.1} parent=31 // pred_check_branch
          %452 = sbr.rel (%p450) target = $region71
        $region70: #{tpu_custom_call.1} parent=31 // pred_region
          %s453 = smul.u32 16, %s29
          %p454 = scmp.lt.s32.totalorder %s453, 63
          %s455 = scalar_select %p454, %s453, 63
          %s456 = smul.addr %s455, 8
          %s457 = scalar_lea.vmem %s4, %s456
          %s458 = smul.u32 16, %s29
        $region71: #{tpu_custom_call.1} parent=31 // pred_fallthru
          _
        // Predicated region
        $region72: #{tpu_custom_call.1} parent=31 // pred_check
          %p459 = pneg %p186
        $region73: #{tpu_custom_call.1} parent=31 // pred_check_branch
          %461 = sbr.rel (%p459) target = $region75
        $region74: #{tpu_custom_call.1} parent=31 // pred_region
          %s462 = smul.u32 16, %s29
          %p463 = scmp.lt.s32.totalorder %s462, 63
          %s464 = scalar_select %p463, %s462, 63
          %s465 = smul.addr %s464, 8
          %s466 = scalar_lea.vmem %s5, %s465
          %s467 = smul.u32 16, %s29
        $region75: #{tpu_custom_call.1} parent=31 // pred_fallthru
          _
        // Predicated region
        $region76: #{tpu_custom_call.1} parent=31 // pred_check
          %p468 = pneg %p212
        $region77: #{tpu_custom_call.1} parent=31 // pred_check_branch
          %470 = sbr.rel (%p468) target = $region79
        $region78: #{tpu_custom_call.1} parent=31 // pred_region
          %s471 = smul.u32 32, %s30
          %p472 = scmp.lt.s32.totalorder %s471, 63
          %s473 = scalar_select %p472, %s471, 63
          %s474 = smul.addr %s473, 4
          %s475 = scalar_lea.vmem %s6, %s474
          %s476 = smul.u32 32, %s30
        $region79: #{tpu_custom_call.1} parent=31 // pred_fallthru
          _
      $region32: #{tpu_custom_call.1} parent=5 // pred_fallthru
        _
      %p477 = scmp.le.s32.totalorder 1, %s22
      %p478 = scmp.lt.s32.totalorder %s22, 9
      %p479 = pnand %p477, %p478
      %p480 = pneg %p479
      // Predicated region
      $region80: #{tpu_custom_call.1} parent=5 // pred_check
        _
      $region81: #{tpu_custom_call.1} parent=5 // pred_check_branch
        %482 = sbr.rel (%p479) target = $region83
      $region82: #{tpu_custom_call.1} parent=5 // pred_region
        %s483 = ssub.s32 %s22, 1
        %s484 = sand.u32 %s101, 1
        %s485 = sand.u32 %s101, 1
        %s486 = smul.addr %s485, 64
        %s487 = scalar_lea.vmem [#allocation3], %s486
        // Predicated region
        $region84: #{tpu_custom_call.1} parent=82 // pred_check
          %p488 = pneg %p114
        $region85: #{tpu_custom_call.1} parent=82 // pred_check_branch
          %490 = sbr.rel (%p488) target = $region87
        $region86: #{tpu_custom_call.1} parent=82 // pred_region
          _
        $region87: #{tpu_custom_call.1} parent=82 // pred_fallthru
          _
        // Predicated region
        $region88: #{tpu_custom_call.1} parent=82 // pred_check
          %p491 = pneg %p239
        $region89: #{tpu_custom_call.1} parent=82 // pred_check_branch
          %493 = sbr.rel (%p491) target = $region91
        $region90: #{tpu_custom_call.1} parent=82 // pred_region
          %494 = dma.done [#allocation5], 128
        $region91: #{tpu_custom_call.1} parent=82 // pred_fallthru
          _
        // Predicated region
        $region92: #{tpu_custom_call.1} parent=82 // pred_check
          %p495 = pneg %p260
        $region93: #{tpu_custom_call.1} parent=82 // pred_check_branch
          %497 = sbr.rel (%p495) target = $region95
        $region94: #{tpu_custom_call.1} parent=82 // pred_region
          %498 = dma.done [#allocation8], 2048
        $region95: #{tpu_custom_call.1} parent=82 // pred_fallthru
          _
        %s499 = smul.u32 16, %s31
        %p500 = scmp.lt.s32.totalorder %s499, 63
        %s501 = scalar_select %p500, %s499, 63
        %s502 = smul.addr %s501, 4
        %s503 = scalar_lea.vmem %s0, %s502
        %p504 = pneg %p60
        %p505 = pneg %p57
        %s506 = smul.u32 16, %s31
        %p507 = scmp.lt.s32.totalorder %s506, 63
        %s508 = scalar_select %p507, %s506, 63
        %s509 = smul.addr %s508, 4
        %s510 = scalar_lea.vmem %s1, %s509
        %p511 = pneg %p86
        %p512 = pneg %p83
        %s513 = sand.u32 %s101, 1
        %s514 = sand.u32 %s101, 1
        %s515 = smul.addr %s514, 64
        %s516 = scalar_lea.vmem [#allocation3], %s515
        %p517 = pneg %p114
        %p518 = pneg %p111
        %s519 = smul.u32 16, %s31
        %p520 = scmp.lt.s32.totalorder %s519, 63
        %s521 = scalar_select %p520, %s519, 63
        %s522 = smul.addr %s521, 4
        %s523 = scalar_lea.vmem %s3, %s522
        %p524 = pneg %p140
        %p525 = pneg %p137
        %s526 = smul.u32 16, %s31
        %p527 = scmp.lt.s32.totalorder %s526, 63
        %s528 = scalar_select %p527, %s526, 63
        %s529 = smul.addr %s528, 8
        %s530 = scalar_lea.vmem %s4, %s529
        %p531 = pneg %p166
        %p532 = pneg %p163
        %s533 = smul.u32 16, %s31
        %p534 = scmp.lt.s32.totalorder %s533, 63
        %s535 = scalar_select %p534, %s533, 63
        %s536 = smul.addr %s535, 8
        %s537 = scalar_lea.vmem %s5, %s536
        %p538 = pneg %p192
        %p539 = pneg %p189
        %s540 = smul.u32 32, %s32
        %p541 = scmp.lt.s32.totalorder %s540, 63
        %s542 = scalar_select %p541, %s540, 63
        %s543 = smul.addr %s542, 4
        %s544 = scalar_lea.vmem %s6, %s543
        %p545 = pneg %p218
        %p546 = pneg %p215
        %p547 = pneg %p239
        %p548 = pneg %p236
        %p549 = pneg %p260
        %p550 = pneg %p257
        %p551 = pneg %p281
        %p552 = pneg %p278
        %p553 = pneg %p302
        %p554 = pneg %p299
        %p555 = pneg %p328
        %p556 = pneg %p325
        %s557 = sand.u32 %s315, 1
        %s558 = scalar_lea.sflag [#allocation6], %s557
        %s559 = sand.u32 %s315, 1
        %s560 = smul.addr %s559, 128
        %s561 = scalar_lea.vmem [#allocation9], %s560
        %s562 = smul.u32 16, %s31
        %p563 = scmp.lt.s32.totalorder %s562, 63
        %s564 = scalar_select %p563, %s562, 63
        %s565 = smul.addr %s564, 4
        %s566 = scalar_lea.vmem %s0, %s565
        %s567 = smul.u32 16, %s31
        %s568 = smul.u32 16, %s31
        %p569 = scmp.lt.s32.totalorder %s568, 63
        %s570 = scalar_select %p569, %s568, 63
        %s571 = smul.addr %s570, 4
        %s572 = scalar_lea.vmem %s1, %s571
        %s573 = smul.u32 16, %s31
        %s574 = smul.u32 4, %s31
        %s575 = smul.u32 2, %s32
        %s576 = smul.u32 16, %s31
        %p577 = scmp.lt.s32.totalorder %s576, 63
        %s578 = scalar_select %p577, %s576, 63
        %s579 = smul.addr %s578, 4
        %s580 = scalar_lea.vmem %s3, %s579
        %s581 = smul.u32 16, %s31
        %s582 = smul.u32 16, %s31
        %p583 = scmp.lt.s32.totalorder %s582, 63
        %s584 = scalar_select %p583, %s582, 63
        %s585 = smul.addr %s584, 8
        %s586 = scalar_lea.vmem %s4, %s585
        %s587 = smul.u32 16, %s31
        %s588 = smul.u32 16, %s31
        %p589 = scmp.lt.s32.totalorder %s588, 63
        %s590 = scalar_select %p589, %s588, 63
        %s591 = smul.addr %s590, 8
        %s592 = scalar_lea.vmem %s5, %s591
        %s593 = smul.u32 16, %s31
        %s594 = smul.u32 32, %s32
        %p595 = scmp.lt.s32.totalorder %s594, 63
        %s596 = scalar_select %p595, %s594, 63
        %s597 = smul.addr %s596, 4
        %s598 = scalar_lea.vmem %s6, %s597
        %s599 = smul.u32 32, %s32
        %s600 = smul.u32 16, %s31
        %p602 = scmp.eq.s32.totalorder %s32, 0
        // Predicated region
        $region96: #{tpu_custom_call.1} parent=82 // pred_check
          %p603 = pneg %p602
        $region97: #{tpu_custom_call.1} parent=82 // pred_check_branch
          %605 = sbr.rel (%p603) target = $region99
        $region98: #{tpu_custom_call.1} parent=82 // pred_region
          %v606 = vld [vmem:[%s580] sm:$0xf]
          %v607 = vld [vmem:[%s580 + $0x4] sm:$0xf]
          %v608 = vld [vmem:[%s580 + $0x8] sm:$0xf]
          %v609 = vld [vmem:[%s580 + $0xc] sm:$0xf]
          %v610 = vld [vmem:[%s580 + $0x10] sm:$0xf]
          %v611 = vld [vmem:[%s580 + $0x14] sm:$0xf]
          %v612 = vld [vmem:[%s580 + $0x18] sm:$0xf]
          %v613 = vld [vmem:[%s580 + $0x1c] sm:$0xf]
          %v614 = vld [vmem:[%s580 + $0x20] sm:$0xf]
          %v615 = vld [vmem:[%s580 + $0x24] sm:$0xf]
          %v616 = vld [vmem:[%s580 + $0x28] sm:$0xf]
          %v617 = vld [vmem:[%s580 + $0x2c] sm:$0xf]
          %v618 = vld [vmem:[%s580 + $0x30] sm:$0xf]
          %v619 = vld [vmem:[%s580 + $0x34] sm:$0xf]
          %v620 = vld [vmem:[%s580 + $0x38] sm:$0xf]
          %v621 = vld [vmem:[%s580 + $0x3c] sm:$0xf]
          %v622 = vld [vmem:[#allocation4] sm:$0xf]
          %v623 = vld [vmem:[#allocation4 + $0x4] sm:$0xf]
          %v640 = vunpack.c.l.b16 %v606
          %v641 = vunpack.c.l.b16 %v607
          %v642 = vunpack.c.l.b16 %v608
          %v643 = vunpack.c.l.b16 %v609
          %v644 = vunpack.c.l.b16 %v610
          %v645 = vunpack.c.l.b16 %v611
          %v646 = vunpack.c.l.b16 %v612
          %v647 = vunpack.c.l.b16 %v613
          %v648 = vunpack.c.l.b16 %v614
          %v649 = vunpack.c.l.b16 %v615
          %v650 = vunpack.c.l.b16 %v616
          %v651 = vunpack.c.l.b16 %v617
          %v652 = vunpack.c.l.b16 %v618
          %v653 = vunpack.c.l.b16 %v619
          %v654 = vunpack.c.l.b16 %v620
          %v655 = vunpack.c.l.b16 %v621
          %v656 = vpack.c.b16 %v641, %v640
          %v657 = vpack.c.b16 %v643, %v642
          %v658 = vpack.c.b16 %v645, %v644
          %v659 = vpack.c.b16 %v647, %v646
          %v660 = vpack.c.b16 %v649, %v648
          %v661 = vpack.c.b16 %v651, %v650
          %v662 = vpack.c.b16 %v653, %v652
          %v663 = vpack.c.b16 %v655, %v654
          %v666 = vunpack.c.l.b16 %v622
          %v667 = vunpack.c.l.b16 %v623
          %v668 = vpack.c.b16 %v667, %v666
          %vm670 = vcmask 130048
          %v672 = vsel %vm670, %v656, 0
          %v675 = vsel %vm670, %v657, 0
          %v678 = vsel %vm670, %v658, 0
          %v681 = vsel %vm670, %v659, 0
          %v684 = vsel %vm670, %v660, 0
          %v687 = vsel %vm670, %v661, 0
          %v690 = vsel %vm670, %v662, 0
          %v693 = vsel %vm670, %v663, 0
          %695 = vmatprep.subr.bf16.mxu0 0
          %696 = vmatpush1.bf16.msra.mxu0 %v668
          %697 = vmatprep.subr.bf16.mxu0 0
          %698 = vmatpush1.bf16.msra.mxu0 0
          %699 = vmatprep.subr.bf16.mxu0 0
          %700 = vmatpush1.bf16.msra.mxu0 0
          %701 = vmatprep.subr.bf16.mxu0 0
          %702 = vmatpush1.bf16.msra.mxu0 0
          %703 = vmatprep.subr.bf16.mxu0 0
          %704 = vmatpush1.bf16.msra.mxu0 0
          %705 = vmatprep.subr.bf16.mxu0 0
          %706 = vmatpush1.bf16.msra.mxu0 0
          %707 = vmatprep.subr.bf16.mxu0 0
          %708 = vmatpush1.bf16.msra.mxu0 0
          %709 = vmatprep.subr.bf16.mxu0 0
          %710 = vmatpush1.bf16.msra.mxu0 0
          %711 = vmatprep.subr.bf16.mxu0 0
          %712 = vmatpush1.bf16.msra.mxu0 0
          %713 = vmatprep.subr.bf16.mxu0 0
          %714 = vmatpush1.bf16.msra.mxu0 0
          %715 = vmatprep.subr.bf16.mxu0 0
          %716 = vmatpush1.bf16.msra.mxu0 0
          %717 = vmatprep.subr.bf16.mxu0 0
          %718 = vmatpush1.bf16.msra.mxu0 0
          %719 = vmatprep.subr.bf16.mxu0 0
          %720 = vmatpush1.bf16.msra.mxu0 0
          %721 = vmatprep.subr.bf16.mxu0 0
          %722 = vmatpush1.bf16.msra.mxu0 0
          %723 = vmatprep.subr.bf16.mxu0 0
          %724 = vmatpush1.bf16.msra.mxu0 0
          %725 = vmatprep.subr.bf16.mxu0 0
          %726 = vmatpush1.bf16.msra.mxu0 0
          %727 = vmatprep.mubr.bf16.mxu0 0
          %728 = vmatmul.mubr.bf16.gmra.mrb[0].mxu0 %v672
          %v729 = vpop.f32.mrb[0].mxu0
          %v730 = vadd.f32 0.0, %v729
          %v731 = vpop.f32.mrb[0].mxu0
          %v732 = vpop.f32.mrb[0].mxu0
          %v733 = vadd.f32 0.0, %v732
          %v734 = vpop.f32.mrb[0].mxu0
          %735 = vmatprep.mubr.bf16.mxu0 0
          %736 = vmatmul.mubr.bf16.gmra.mrb[0].mxu0 %v675
          %v737 = vpop.f32.mrb[0].mxu0
          %v738 = vadd.f32 0.0, %v737
          %v739 = vpop.f32.mrb[0].mxu0
          %v740 = vpop.f32.mrb[0].mxu0
          %v741 = vadd.f32 0.0, %v740
          %v742 = vpop.f32.mrb[0].mxu0
          %743 = vmatprep.mubr.bf16.mxu0 0
          %744 = vmatmul.mubr.bf16.gmra.mrb[0].mxu0 %v678
          %v745 = vpop.f32.mrb[0].mxu0
          %v746 = vadd.f32 0.0, %v745
          %v747 = vpop.f32.mrb[0].mxu0
          %v748 = vpop.f32.mrb[0].mxu0
          %v749 = vadd.f32 0.0, %v748
          %v750 = vpop.f32.mrb[0].mxu0
          %751 = vmatprep.mubr.bf16.mxu0 0
          %752 = vmatmul.mubr.bf16.gmra.mrb[0].mxu0 %v681
          %v753 = vpop.f32.mrb[0].mxu0
          %v754 = vadd.f32 0.0, %v753
          %v755 = vpop.f32.mrb[0].mxu0
          %v756 = vpop.f32.mrb[0].mxu0
          %v757 = vadd.f32 0.0, %v756
          %v758 = vpop.f32.mrb[0].mxu0
          %759 = vmatprep.mubr.bf16.mxu0 0
          %760 = vmatmul.mubr.bf16.gmra.mrb[0].mxu0 %v684
          %v761 = vpop.f32.mrb[0].mxu0
          %v762 = vadd.f32 0.0, %v761
          %v763 = vpop.f32.mrb[0].mxu0
          %v764 = vpop.f32.mrb[0].mxu0
          %v765 = vadd.f32 0.0, %v764
          %v766 = vpop.f32.mrb[0].mxu0
          %767 = vmatprep.mubr.bf16.mxu0 0
          %768 = vmatmul.mubr.bf16.gmra.mrb[0].mxu0 %v687
          %v769 = vpop.f32.mrb[0].mxu0
          %v770 = vadd.f32 0.0, %v769
          %v771 = vpop.f32.mrb[0].mxu0
          %v772 = vpop.f32.mrb[0].mxu0
          %v773 = vadd.f32 0.0, %v772
          %v774 = vpop.f32.mrb[0].mxu0
          %775 = vmatprep.mubr.bf16.mxu0 0
          %776 = vmatmul.mubr.bf16.gmra.mrb[0].mxu0 %v690
          %v777 = vpop.f32.mrb[0].mxu0
          %v778 = vadd.f32 0.0, %v777
          %v779 = vpop.f32.mrb[0].mxu0
          %v780 = vpop.f32.mrb[0].mxu0
          %v781 = vadd.f32 0.0, %v780
          %v782 = vpop.f32.mrb[0].mxu0
          %783 = vmatprep.mubr.bf16.mxu0 0
          %784 = vmatmul.mubr.bf16.gmra.mrb[0].mxu0 %v693
          %v785 = vpop.f32.mrb[0].mxu0
          %v786 = vadd.f32 0.0, %v785
          %v787 = vpop.f32.mrb[0].mxu0
          %v788 = vpop.f32.mrb[0].mxu0
          %v789 = vadd.f32 0.0, %v788
          %v790 = vpop.f32.mrb[0].mxu0
          %791 = vdwg.mxu0
          %792 = vst [vmem:[#allocation2] sm:$0xff] %v730
          %793 = vst [vmem:[#allocation2 + $0x8] sm:$0xff] %v733
          %794 = vst [vmem:[#allocation2 + $0x10] sm:$0xff] %v738
          %795 = vst [vmem:[#allocation2 + $0x18] sm:$0xff] %v741
          %796 = vst [vmem:[#allocation2 + $0x20] sm:$0xff] %v746
          %797 = vst [vmem:[#allocation2 + $0x28] sm:$0xff] %v749
          %798 = vst [vmem:[#allocation2 + $0x30] sm:$0xff] %v754
          %799 = vst [vmem:[#allocation2 + $0x38] sm:$0xff] %v757
          %800 = vst [vmem:[#allocation2 + $0x40] sm:$0xff] %v762
          %801 = vst [vmem:[#allocation2 + $0x48] sm:$0xff] %v765
          %802 = vst [vmem:[#allocation2 + $0x50] sm:$0xff] %v770
          %803 = vst [vmem:[#allocation2 + $0x58] sm:$0xff] %v773
          %804 = vst [vmem:[#allocation2 + $0x60] sm:$0xff] %v778
          %805 = vst [vmem:[#allocation2 + $0x68] sm:$0xff] %v781
          %806 = vst [vmem:[#allocation2 + $0x70] sm:$0xff] %v786
          %807 = vst [vmem:[#allocation2 + $0x78] sm:$0xff] %v789
        $region99: #{tpu_custom_call.1} parent=82 // pred_fallthru
          _
        %v808 = vld [vmem:[%s487] sm:$0xff]
        %v809 = vld [vmem:[%s487 + $0x8] sm:$0xff]
        %v810 = vld [vmem:[%s487 + $0x10] sm:$0xff]
        %v811 = vld [vmem:[%s487 + $0x18] sm:$0xff]
        %v812 = vld [vmem:[%s487 + $0x20] sm:$0xff]
        %v813 = vld [vmem:[%s487 + $0x28] sm:$0xff]
        %v814 = vld [vmem:[%s487 + $0x30] sm:$0xff]
        %v815 = vld [vmem:[%s487 + $0x38] sm:$0xff]
        %v816 = vunpack.c.l.s8.bf16 %v808
        %v817 = vunpack.c.l.s8.bf16 %v809
        %v818 = vunpack.c.h.s8.bf16 %v808
        %v819 = vunpack.c.h.s8.bf16 %v809
        %v820 = vunpack.c.l.s8.bf16 %v810
        %v821 = vunpack.c.l.s8.bf16 %v811
        %v822 = vunpack.c.h.s8.bf16 %v810
        %v823 = vunpack.c.h.s8.bf16 %v811
        %v824 = vunpack.c.l.s8.bf16 %v812
        %v825 = vunpack.c.l.s8.bf16 %v813
        %v826 = vunpack.c.h.s8.bf16 %v812
        %v827 = vunpack.c.h.s8.bf16 %v813
        %v828 = vunpack.c.l.s8.bf16 %v814
        %v829 = vunpack.c.l.s8.bf16 %v815
        %v830 = vunpack.c.h.s8.bf16 %v814
        %v831 = vunpack.c.h.s8.bf16 %v815
        %v832 = vld [vmem:[#allocation2] sm:$0xff]
        %v833 = vld [vmem:[#allocation2 + $0x8] sm:$0xff]
        %v834 = vld [vmem:[#allocation2 + $0x10] sm:$0xff]
        %v835 = vld [vmem:[#allocation2 + $0x18] sm:$0xff]
        %v836 = vld [vmem:[#allocation2 + $0x20] sm:$0xff]
        %v837 = vld [vmem:[#allocation2 + $0x28] sm:$0xff]
        %v838 = vld [vmem:[#allocation2 + $0x30] sm:$0xff]
        %v839 = vld [vmem:[#allocation2 + $0x38] sm:$0xff]
        %v840 = vld [vmem:[#allocation2 + $0x40] sm:$0xff]
        %v841 = vld [vmem:[#allocation2 + $0x48] sm:$0xff]
        %v842 = vld [vmem:[#allocation2 + $0x50] sm:$0xff]
        %v843 = vld [vmem:[#allocation2 + $0x58] sm:$0xff]
        %v844 = vld [vmem:[#allocation2 + $0x60] sm:$0xff]
        %v845 = vld [vmem:[#allocation2 + $0x68] sm:$0xff]
        %v846 = vld [vmem:[#allocation2 + $0x70] sm:$0xff]
        %v847 = vld [vmem:[#allocation2 + $0x78] sm:$0xff]
        %v848 = vld [vmem:[%s598] sm:$0xf]
        %v849 = vld [vmem:[%s598 + $0x4] sm:$0xf]
        %v850 = vld [vmem:[%s598 + $0x8] sm:$0xf]
        %v851 = vld [vmem:[%s598 + $0xc] sm:$0xf]
        %v852 = vld [vmem:[%s598 + $0x10] sm:$0xf]
        %v853 = vld [vmem:[%s598 + $0x14] sm:$0xf]
        %v854 = vld [vmem:[%s598 + $0x18] sm:$0xf]
        %v855 = vld [vmem:[%s598 + $0x1c] sm:$0xf]
        %v856 = vld [vmem:[%s598 + $0x20] sm:$0xf]
        %v857 = vld [vmem:[%s598 + $0x24] sm:$0xf]
        %v858 = vld [vmem:[%s598 + $0x28] sm:$0xf]
        %v859 = vld [vmem:[%s598 + $0x2c] sm:$0xf]
        %v860 = vld [vmem:[%s598 + $0x30] sm:$0xf]
        %v861 = vld [vmem:[%s598 + $0x34] sm:$0xf]
        %v862 = vld [vmem:[%s598 + $0x38] sm:$0xf]
        %v863 = vld [vmem:[%s598 + $0x3c] sm:$0xf]
        %v864 = vld [vmem:[%s598 + $0x40] sm:$0xf]
        %v865 = vld [vmem:[%s598 + $0x44] sm:$0xf]
        %v866 = vld [vmem:[%s598 + $0x48] sm:$0xf]
        %v867 = vld [vmem:[%s598 + $0x4c] sm:$0xf]
        %v868 = vld [vmem:[%s598 + $0x50] sm:$0xf]
        %v869 = vld [vmem:[%s598 + $0x54] sm:$0xf]
        %v870 = vld [vmem:[%s598 + $0x58] sm:$0xf]
        %v871 = vld [vmem:[%s598 + $0x5c] sm:$0xf]
        %v872 = vld [vmem:[%s598 + $0x60] sm:$0xf]
        %v873 = vld [vmem:[%s598 + $0x64] sm:$0xf]
        %v874 = vld [vmem:[%s598 + $0x68] sm:$0xf]
        %v875 = vld [vmem:[%s598 + $0x6c] sm:$0xf]
        %v876 = vld [vmem:[%s598 + $0x70] sm:$0xf]
        %v877 = vld [vmem:[%s598 + $0x74] sm:$0xf]
        %v878 = vld [vmem:[%s598 + $0x78] sm:$0xf]
        %v879 = vld [vmem:[%s598 + $0x7c] sm:$0xf]
        %v912 = vunpack.c.l.b16 %v848
        %v913 = vunpack.c.l.b16 %v849
        %v914 = vunpack.c.l.b16 %v850
        %v915 = vunpack.c.l.b16 %v851
        %v916 = vunpack.c.l.b16 %v852
        %v917 = vunpack.c.l.b16 %v853
        %v918 = vunpack.c.l.b16 %v854
        %v919 = vunpack.c.l.b16 %v855
        %v920 = vunpack.c.l.b16 %v856
        %v921 = vunpack.c.l.b16 %v857
        %v922 = vunpack.c.l.b16 %v858
        %v923 = vunpack.c.l.b16 %v859
        %v924 = vunpack.c.l.b16 %v860
        %v925 = vunpack.c.l.b16 %v861
        %v926 = vunpack.c.l.b16 %v862
        %v927 = vunpack.c.l.b16 %v863
        %v928 = vunpack.c.l.b16 %v864
        %v929 = vunpack.c.l.b16 %v865
        %v930 = vunpack.c.l.b16 %v866
        %v931 = vunpack.c.l.b16 %v867
        %v932 = vunpack.c.l.b16 %v868
        %v933 = vunpack.c.l.b16 %v869
        %v934 = vunpack.c.l.b16 %v870
        %v935 = vunpack.c.l.b16 %v871
        %v936 = vunpack.c.l.b16 %v872
        %v937 = vunpack.c.l.b16 %v873
        %v938 = vunpack.c.l.b16 %v874
        %v939 = vunpack.c.l.b16 %v875
        %v940 = vunpack.c.l.b16 %v876
        %v941 = vunpack.c.l.b16 %v877
        %v942 = vunpack.c.l.b16 %v878
        %v943 = vunpack.c.l.b16 %v879
        %v944 = vpack.c.b16 %v913, %v912
        %v945 = vpack.c.b16 %v915, %v914
        %v946 = vpack.c.b16 %v917, %v916
        %v947 = vpack.c.b16 %v919, %v918
        %v948 = vpack.c.b16 %v921, %v920
        %v949 = vpack.c.b16 %v923, %v922
        %v950 = vpack.c.b16 %v925, %v924
        %v951 = vpack.c.b16 %v927, %v926
        %v952 = vpack.c.b16 %v929, %v928
        %v953 = vpack.c.b16 %v931, %v930
        %v954 = vpack.c.b16 %v933, %v932
        %v955 = vpack.c.b16 %v935, %v934
        %v956 = vpack.c.b16 %v937, %v936
        %v957 = vpack.c.b16 %v939, %v938
        %v958 = vpack.c.b16 %v941, %v940
        %v959 = vpack.c.b16 %v943, %v942
        %976 = vmatprep.subr.bf16.mxu0 0
        %977 = vmatpush1.bf16.msra.mxu0 %v944
        %978 = vmatprep.subr.bf16.mxu0 0
        %979 = vmatpush1.bf16.msra.mxu0 %v945
        %980 = vmatprep.subr.bf16.mxu0 0
        %981 = vmatpush1.bf16.msra.mxu0 %v946
        %982 = vmatprep.subr.bf16.mxu0 0
        %983 = vmatpush1.bf16.msra.mxu0 %v947
        %984 = vmatprep.subr.bf16.mxu0 0
        %985 = vmatpush1.bf16.msra.mxu0 %v948
        %986 = vmatprep.subr.bf16.mxu0 0
        %987 = vmatpush1.bf16.msra.mxu0 %v949
        %988 = vmatprep.subr.bf16.mxu0 0
        %989 = vmatpush1.bf16.msra.mxu0 %v950
        %990 = vmatprep.subr.bf16.mxu0 0
        %991 = vmatpush1.bf16.msra.mxu0 %v951
        %992 = vmatprep.subr.bf16.mxu0 0
        %993 = vmatpush1.bf16.msra.mxu0 %v952
        %994 = vmatprep.subr.bf16.mxu0 0
        %995 = vmatpush1.bf16.msra.mxu0 %v953
        %996 = vmatprep.subr.bf16.mxu0 0
        %997 = vmatpush1.bf16.msra.mxu0 %v954
        %998 = vmatprep.subr.bf16.mxu0 0
        %999 = vmatpush1.bf16.msra.mxu0 %v955
        %1000 = vmatprep.subr.bf16.mxu0 0
        %1001 = vmatpush1.bf16.msra.mxu0 %v956
        %1002 = vmatprep.subr.bf16.mxu0 0
        %1003 = vmatpush1.bf16.msra.mxu0 %v957
        %1004 = vmatprep.subr.bf16.mxu0 0
        %1005 = vmatpush1.bf16.msra.mxu0 %v958
        %1006 = vmatprep.subr.bf16.mxu0 0
        %1007 = vmatpush1.bf16.msra.mxu0 %v959
        %1008 = vmatprep.mubr.bf16.mxu0 %v817
        %1009 = vmatmul.mubr.bf16.gmra.mrb[0].mxu0 %v816
        %v1010 = vpop.f32.mrb[0].mxu0
        %v1011 = vadd.f32 0.0, %v1010
        %v1012 = vpop.f32.mrb[0].mxu0
        %v1013 = vpop.f32.mrb[0].mxu0
        %v1014 = vadd.f32 0.0, %v1013
        %v1015 = vpop.f32.mrb[0].mxu0
        %1016 = vmatprep.mubr.bf16.mxu0 %v819
        %1017 = vmatmul.mubr.bf16.gmra.mrb[0].mxu0 %v818
        %v1018 = vpop.f32.mrb[0].mxu0
        %v1019 = vadd.f32 0.0, %v1018
        %v1020 = vpop.f32.mrb[0].mxu0
        %v1021 = vpop.f32.mrb[0].mxu0
        %v1022 = vadd.f32 0.0, %v1021
        %v1023 = vpop.f32.mrb[0].mxu0
        %1024 = vmatprep.mubr.bf16.mxu0 %v821
        %1025 = vmatmul.mubr.bf16.gmra.mrb[0].mxu0 %v820
        %v1026 = vpop.f32.mrb[0].mxu0
        %v1027 = vadd.f32 0.0, %v1026
        %v1028 = vpop.f32.mrb[0].mxu0
        %v1029 = vpop.f32.mrb[0].mxu0
        %v1030 = vadd.f32 0.0, %v1029
        %v1031 = vpop.f32.mrb[0].mxu0
        %1032 = vmatprep.mubr.bf16.mxu0 %v823
        %1033 = vmatmul.mubr.bf16.gmra.mrb[0].mxu0 %v822
        %v1034 = vpop.f32.mrb[0].mxu0
        %v1035 = vadd.f32 0.0, %v1034
        %v1036 = vpop.f32.mrb[0].mxu0
        %v1037 = vpop.f32.mrb[0].mxu0
        %v1038 = vadd.f32 0.0, %v1037
        %v1039 = vpop.f32.mrb[0].mxu0
        %1040 = vmatprep.mubr.bf16.mxu0 %v825
        %1041 = vmatmul.mubr.bf16.gmra.mrb[0].mxu0 %v824
        %v1042 = vpop.f32.mrb[0].mxu0
        %v1043 = vadd.f32 0.0, %v1042
        %v1044 = vpop.f32.mrb[0].mxu0
        %v1045 = vpop.f32.mrb[0].mxu0
        %v1046 = vadd.f32 0.0, %v1045
        %v1047 = vpop.f32.mrb[0].mxu0
        %1048 = vmatprep.mubr.bf16.mxu0 %v827
        %1049 = vmatmul.mubr.bf16.gmra.mrb[0].mxu0 %v826
        %v1050 = vpop.f32.mrb[0].mxu0
        %v1051 = vadd.f32 0.0, %v1050
        %v1052 = vpop.f32.mrb[0].mxu0
        %v1053 = vpop.f32.mrb[0].mxu0
        %v1054 = vadd.f32 0.0, %v1053
        %v1055 = vpop.f32.mrb[0].mxu0
        %1056 = vmatprep.mubr.bf16.mxu0 %v829
        %1057 = vmatmul.mubr.bf16.gmra.mrb[0].mxu0 %v828
        %v1058 = vpop.f32.mrb[0].mxu0
        %v1059 = vadd.f32 0.0, %v1058
        %v1060 = vpop.f32.mrb[0].mxu0
        %v1061 = vpop.f32.mrb[0].mxu0
        %v1062 = vadd.f32 0.0, %v1061
        %v1063 = vpop.f32.mrb[0].mxu0
        %1064 = vmatprep.mubr.bf16.mxu0 %v831
        %1065 = vmatmul.mubr.bf16.gmra.mrb[0].mxu0 %v830
        %v1066 = vpop.f32.mrb[0].mxu0
        %v1067 = vadd.f32 0.0, %v1066
        %v1068 = vpop.f32.mrb[0].mxu0
        %v1069 = vpop.f32.mrb[0].mxu0
        %v1070 = vadd.f32 0.0, %v1069
        %v1071 = vpop.f32.mrb[0].mxu0
        %1072 = vdwg.mxu0
        %v1073 = vadd.f32 %v832, %v1011
        %v1074 = vadd.f32 %v833, %v1014
        %v1075 = vadd.f32 %v834, %v1019
        %v1076 = vadd.f32 %v835, %v1022
        %v1077 = vadd.f32 %v836, %v1027
        %v1078 = vadd.f32 %v837, %v1030
        %v1079 = vadd.f32 %v838, %v1035
        %v1080 = vadd.f32 %v839, %v1038
        %v1081 = vadd.f32 %v840, %v1043
        %v1082 = vadd.f32 %v841, %v1046
        %v1083 = vadd.f32 %v842, %v1051
        %v1084 = vadd.f32 %v843, %v1054
        %v1085 = vadd.f32 %v844, %v1059
        %v1086 = vadd.f32 %v845, %v1062
        %v1087 = vadd.f32 %v846, %v1067
        %v1088 = vadd.f32 %v847, %v1070
        %1089 = vst [vmem:[#allocation2] sm:$0xff] %v1073
        %1090 = vst [vmem:[#allocation2 + $0x8] sm:$0xff] %v1074
        %1091 = vst [vmem:[#allocation2 + $0x10] sm:$0xff] %v1075
        %1092 = vst [vmem:[#allocation2 + $0x18] sm:$0xff] %v1076
        %1093 = vst [vmem:[#allocation2 + $0x20] sm:$0xff] %v1077
        %1094 = vst [vmem:[#allocation2 + $0x28] sm:$0xff] %v1078
        %1095 = vst [vmem:[#allocation2 + $0x30] sm:$0xff] %v1079
        %1096 = vst [vmem:[#allocation2 + $0x38] sm:$0xff] %v1080
        %1097 = vst [vmem:[#allocation2 + $0x40] sm:$0xff] %v1081
        %1098 = vst [vmem:[#allocation2 + $0x48] sm:$0xff] %v1082
        %1099 = vst [vmem:[#allocation2 + $0x50] sm:$0xff] %v1083
        %1100 = vst [vmem:[#allocation2 + $0x58] sm:$0xff] %v1084
        %1101 = vst [vmem:[#allocation2 + $0x60] sm:$0xff] %v1085
        %1102 = vst [vmem:[#allocation2 + $0x68] sm:$0xff] %v1086
        %1103 = vst [vmem:[#allocation2 + $0x70] sm:$0xff] %v1087
        %1104 = vst [vmem:[#allocation2 + $0x78] sm:$0xff] %v1088
        %p1105 = scmp.eq.s32.totalorder %s32, 1
        // Predicated region
        $region100: #{tpu_custom_call.1} parent=82 // pred_check
          %p1106 = pneg %p1105
        $region101: #{tpu_custom_call.1} parent=82 // pred_check_branch
          %1108 = sbr.rel (%p1106) target = $region103
        $region102: #{tpu_custom_call.1} parent=82 // pred_region
          %v1109 = vld [vmem:[%s566] sm:$0xf]
          %v1110 = vld [vmem:[%s566 + $0x4] sm:$0xf]
          %v1111 = vld [vmem:[%s566 + $0x8] sm:$0xf]
          %v1112 = vld [vmem:[%s566 + $0xc] sm:$0xf]
          %v1113 = vld [vmem:[%s566 + $0x10] sm:$0xf]
          %v1114 = vld [vmem:[%s566 + $0x14] sm:$0xf]
          %v1115 = vld [vmem:[%s566 + $0x18] sm:$0xf]
          %v1116 = vld [vmem:[%s566 + $0x1c] sm:$0xf]
          %v1117 = vld [vmem:[%s566 + $0x20] sm:$0xf]
          %v1118 = vld [vmem:[%s566 + $0x24] sm:$0xf]
          %v1119 = vld [vmem:[%s566 + $0x28] sm:$0xf]
          %v1120 = vld [vmem:[%s566 + $0x2c] sm:$0xf]
          %v1121 = vld [vmem:[%s566 + $0x30] sm:$0xf]
          %v1122 = vld [vmem:[%s566 + $0x34] sm:$0xf]
          %v1123 = vld [vmem:[%s566 + $0x38] sm:$0xf]
          %v1124 = vld [vmem:[%s566 + $0x3c] sm:$0xf]
          %v1125 = vld [vmem:[%s572] sm:$0xf]
          %v1126 = vld [vmem:[%s572 + $0x4] sm:$0xf]
          %v1127 = vld [vmem:[%s572 + $0x8] sm:$0xf]
          %v1128 = vld [vmem:[%s572 + $0xc] sm:$0xf]
          %v1129 = vld [vmem:[%s572 + $0x10] sm:$0xf]
          %v1130 = vld [vmem:[%s572 + $0x14] sm:$0xf]
          %v1131 = vld [vmem:[%s572 + $0x18] sm:$0xf]
          %v1132 = vld [vmem:[%s572 + $0x1c] sm:$0xf]
          %v1133 = vld [vmem:[%s572 + $0x20] sm:$0xf]
          %v1134 = vld [vmem:[%s572 + $0x24] sm:$0xf]
          %v1135 = vld [vmem:[%s572 + $0x28] sm:$0xf]
          %v1136 = vld [vmem:[%s572 + $0x2c] sm:$0xf]
          %v1137 = vld [vmem:[%s572 + $0x30] sm:$0xf]
          %v1138 = vld [vmem:[%s572 + $0x34] sm:$0xf]
          %v1139 = vld [vmem:[%s572 + $0x38] sm:$0xf]
          %v1140 = vld [vmem:[%s572 + $0x3c] sm:$0xf]
          %v1141 = vld [vmem:[#allocation7] sm:$0xff]
          %v1142 = vld [vmem:[#allocation7 + $0x8] sm:$0xff]
          %v1143 = vld [vmem:[#allocation7 + $0x10] sm:$0xff]
          %v1144 = vld [vmem:[#allocation7 + $0x18] sm:$0xff]
          %v1145 = vld [vmem:[#allocation7 + $0x20] sm:$0xff]
          %v1146 = vld [vmem:[#allocation7 + $0x28] sm:$0xff]
          %v1147 = vld [vmem:[#allocation7 + $0x30] sm:$0xff]
          %v1148 = vld [vmem:[#allocation7 + $0x38] sm:$0xff]
          %v1149 = vld [vmem:[#allocation7 + $0x40] sm:$0xff]
          %v1150 = vld [vmem:[#allocation7 + $0x48] sm:$0xff]
          %v1151 = vld [vmem:[#allocation7 + $0x50] sm:$0xff]
          %v1152 = vld [vmem:[#allocation7 + $0x58] sm:$0xff]
          %v1153 = vld [vmem:[#allocation7 + $0x60] sm:$0xff]
          %v1154 = vld [vmem:[#allocation7 + $0x68] sm:$0xff]
          %v1155 = vld [vmem:[#allocation7 + $0x70] sm:$0xff]
          %v1156 = vld [vmem:[#allocation7 + $0x78] sm:$0xff]
          %v1173 = vunpack.c.l.b16 %v1109
          %v1174 = vunpack.c.l.b16 %v1110
          %v1175 = vunpack.c.l.b16 %v1111
          %v1176 = vunpack.c.l.b16 %v1112
          %v1177 = vunpack.c.l.b16 %v1113
          %v1178 = vunpack.c.l.b16 %v1114
          %v1179 = vunpack.c.l.b16 %v1115
          %v1180 = vunpack.c.l.b16 %v1116
          %v1181 = vunpack.c.l.b16 %v1117
          %v1182 = vunpack.c.l.b16 %v1118
          %v1183 = vunpack.c.l.b16 %v1119
          %v1184 = vunpack.c.l.b16 %v1120
          %v1185 = vunpack.c.l.b16 %v1121
          %v1186 = vunpack.c.l.b16 %v1122
          %v1187 = vunpack.c.l.b16 %v1123
          %v1188 = vunpack.c.l.b16 %v1124
          %v1189 = vpack.c.b16 %v1174, %v1173
          %v1190 = vpack.c.b16 %v1176, %v1175
          %v1191 = vpack.c.b16 %v1178, %v1177
          %v1192 = vpack.c.b16 %v1180, %v1179
          %v1193 = vpack.c.b16 %v1182, %v1181
          %v1194 = vpack.c.b16 %v1184, %v1183
          %v1195 = vpack.c.b16 %v1186, %v1185
          %v1196 = vpack.c.b16 %v1188, %v1187
          %v1221 = vunpack.c.l.b16 %v1141
          %v1222 = vunpack.c.h.b16 %v1141
          %v1223 = vunpack.c.l.b16 %v1142
          %v1224 = vunpack.c.h.b16 %v1142
          %v1225 = vunpack.c.l.b16 %v1143
          %v1226 = vunpack.c.h.b16 %v1143
          %v1227 = vunpack.c.l.b16 %v1144
          %v1228 = vunpack.c.h.b16 %v1144
          %v1229 = vunpack.c.l.b16 %v1145
          %v1230 = vunpack.c.h.b16 %v1145
          %v1231 = vunpack.c.l.b16 %v1146
          %v1232 = vunpack.c.h.b16 %v1146
          %v1233 = vunpack.c.l.b16 %v1147
          %v1234 = vunpack.c.h.b16 %v1147
          %v1235 = vunpack.c.l.b16 %v1148
          %v1236 = vunpack.c.h.b16 %v1148
          %v1237 = vunpack.c.l.b16 %v1149
          %v1238 = vunpack.c.h.b16 %v1149
          %v1239 = vunpack.c.l.b16 %v1150
          %v1240 = vunpack.c.h.b16 %v1150
          %v1241 = vunpack.c.l.b16 %v1151
          %v1242 = vunpack.c.h.b16 %v1151
          %v1243 = vunpack.c.l.b16 %v1152
          %v1244 = vunpack.c.h.b16 %v1152
          %v1245 = vunpack.c.l.b16 %v1153
          %v1246 = vunpack.c.h.b16 %v1153
          %v1247 = vunpack.c.l.b16 %v1154
          %v1248 = vunpack.c.h.b16 %v1154
          %v1249 = vunpack.c.l.b16 %v1155
          %v1250 = vunpack.c.h.b16 %v1155
          %v1251 = vunpack.c.l.b16 %v1156
          %v1252 = vunpack.c.h.b16 %v1156
          %v1253 = vpack.c.b16 %v1223, %v1221
          %v1254 = vpack.c.b16 %v1224, %v1222
          %v1255 = vpack.c.b16 %v1227, %v1225
          %v1256 = vpack.c.b16 %v1228, %v1226
          %v1257 = vpack.c.b16 %v1231, %v1229
          %v1258 = vpack.c.b16 %v1232, %v1230
          %v1259 = vpack.c.b16 %v1235, %v1233
          %v1260 = vpack.c.b16 %v1236, %v1234
          %v1261 = vpack.c.b16 %v1239, %v1237
          %v1262 = vpack.c.b16 %v1240, %v1238
          %v1263 = vpack.c.b16 %v1243, %v1241
          %v1264 = vpack.c.b16 %v1244, %v1242
          %v1265 = vpack.c.b16 %v1247, %v1245
          %v1266 = vpack.c.b16 %v1248, %v1246
          %v1267 = vpack.c.b16 %v1251, %v1249
          %v1268 = vpack.c.b16 %v1252, %v1250
          %1285 = vmatprep.subr.bf16.mxu0 %v1254
          %1286 = vmatpush1.bf16.msra.mxu0 %v1253
          %1287 = vmatprep.subr.bf16.mxu0 %v1256
          %1288 = vmatpush1.bf16.msra.mxu0 %v1255
          %1289 = vmatprep.subr.bf16.mxu0 %v1258
          %1290 = vmatpush1.bf16.msra.mxu0 %v1257
          %1291 = vmatprep.subr.bf16.mxu0 %v1260
          %1292 = vmatpush1.bf16.msra.mxu0 %v1259
          %1293 = vmatprep.subr.bf16.mxu0 %v1262
          %1294 = vmatpush1.bf16.msra.mxu0 %v1261
          %1295 = vmatprep.subr.bf16.mxu0 %v1264
          %1296 = vmatpush1.bf16.msra.mxu0 %v1263
          %1297 = vmatprep.subr.bf16.mxu0 %v1266
          %1298 = vmatpush1.bf16.msra.mxu0 %v1265
          %1299 = vmatprep.subr.bf16.mxu0 %v1268
          %1300 = vmatpush1.bf16.msra.mxu0 %v1267
          %1301 = vmatprep.subr.bf16.mxu0 0
          %1302 = vmatpush1.bf16.msra.mxu0 0
          %1303 = vmatprep.subr.bf16.mxu0 0
          %1304 = vmatpush1.bf16.msra.mxu0 0
          %1305 = vmatprep.subr.bf16.mxu0 0
          %1306 = vmatpush1.bf16.msra.mxu0 0
          %1307 = vmatprep.subr.bf16.mxu0 0
          %1308 = vmatpush1.bf16.msra.mxu0 0
          %1309 = vmatprep.subr.bf16.mxu0 0
          %1310 = vmatpush1.bf16.msra.mxu0 0
          %1311 = vmatprep.subr.bf16.mxu0 0
          %1312 = vmatpush1.bf16.msra.mxu0 0
          %1313 = vmatprep.subr.bf16.mxu0 0
          %1314 = vmatpush1.bf16.msra.mxu0 0
          %1315 = vmatprep.subr.bf16.mxu0 0
          %1316 = vmatpush1.bf16.msra.mxu0 0
          %1317 = vmatprep.mubr.bf16.mxu0 0
          %1318 = vmatmul.mubr.bf16.gmra.mrb[0].mxu0 %v1189
          %v1319 = vpop.f32.mrb[0].mxu0
          %v1320 = vadd.f32 0.0, %v1319
          %v1321 = vpop.f32.mrb[0].mxu0
          %v1322 = vadd.f32 0.0, %v1321
          %v1323 = vpop.f32.mrb[0].mxu0
          %v1324 = vadd.f32 0.0, %v1323
          %v1325 = vpop.f32.mrb[0].mxu0
          %v1326 = vadd.f32 0.0, %v1325
          %1327 = vmatprep.mubr.bf16.mxu0 0
          %1328 = vmatmul.mubr.bf16.gmra.mrb[0].mxu0 %v1190
          %v1329 = vpop.f32.mrb[0].mxu0
          %v1330 = vadd.f32 0.0, %v1329
          %v1331 = vpop.f32.mrb[0].mxu0
          %v1332 = vadd.f32 0.0, %v1331
          %v1333 = vpop.f32.mrb[0].mxu0
          %v1334 = vadd.f32 0.0, %v1333
          %v1335 = vpop.f32.mrb[0].mxu0
          %v1336 = vadd.f32 0.0, %v1335
          %1337 = vmatprep.mubr.bf16.mxu0 0
          %1338 = vmatmul.mubr.bf16.gmra.mrb[0].mxu0 %v1191
          %v1339 = vpop.f32.mrb[0].mxu0
          %v1340 = vadd.f32 0.0, %v1339
          %v1341 = vpop.f32.mrb[0].mxu0
          %v1342 = vadd.f32 0.0, %v1341
          %v1343 = vpop.f32.mrb[0].mxu0
          %v1344 = vadd.f32 0.0, %v1343
          %v1345 = vpop.f32.mrb[0].mxu0
          %v1346 = vadd.f32 0.0, %v1345
          %1347 = vmatprep.mubr.bf16.mxu0 0
          %1348 = vmatmul.mubr.bf16.gmra.mrb[0].mxu0 %v1192
          %v1349 = vpop.f32.mrb[0].mxu0
          %v1350 = vadd.f32 0.0, %v1349
          %v1351 = vpop.f32.mrb[0].mxu0
          %v1352 = vadd.f32 0.0, %v1351
          %v1353 = vpop.f32.mrb[0].mxu0
          %v1354 = vadd.f32 0.0, %v1353
          %v1355 = vpop.f32.mrb[0].mxu0
          %v1356 = vadd.f32 0.0, %v1355
          %1357 = vmatprep.mubr.bf16.mxu0 0
          %1358 = vmatmul.mubr.bf16.gmra.mrb[0].mxu0 %v1193
          %v1359 = vpop.f32.mrb[0].mxu0
          %v1360 = vadd.f32 0.0, %v1359
          %v1361 = vpop.f32.mrb[0].mxu0
          %v1362 = vadd.f32 0.0, %v1361
          %v1363 = vpop.f32.mrb[0].mxu0
          %v1364 = vadd.f32 0.0, %v1363
          %v1365 = vpop.f32.mrb[0].mxu0
          %v1366 = vadd.f32 0.0, %v1365
          %1367 = vmatprep.mubr.bf16.mxu0 0
          %1368 = vmatmul.mubr.bf16.gmra.mrb[0].mxu0 %v1194
          %v1369 = vpop.f32.mrb[0].mxu0
          %v1370 = vadd.f32 0.0, %v1369
          %v1371 = vpop.f32.mrb[0].mxu0
          %v1372 = vadd.f32 0.0, %v1371
          %v1373 = vpop.f32.mrb[0].mxu0
          %v1374 = vadd.f32 0.0, %v1373
          %v1375 = vpop.f32.mrb[0].mxu0
          %v1376 = vadd.f32 0.0, %v1375
          %1377 = vmatprep.mubr.bf16.mxu0 0
          %1378 = vmatmul.mubr.bf16.gmra.mrb[0].mxu0 %v1195
          %v1379 = vpop.f32.mrb[0].mxu0
          %v1380 = vadd.f32 0.0, %v1379
          %v1381 = vpop.f32.mrb[0].mxu0
          %v1382 = vadd.f32 0.0, %v1381
          %v1383 = vpop.f32.mrb[0].mxu0
          %v1384 = vadd.f32 0.0, %v1383
          %v1385 = vpop.f32.mrb[0].mxu0
          %v1386 = vadd.f32 0.0, %v1385
          %1387 = vmatprep.mubr.bf16.mxu0 0
          %1388 = vmatmul.mubr.bf16.gmra.mrb[0].mxu0 %v1196
          %v1389 = vpop.f32.mrb[0].mxu0
          %v1390 = vadd.f32 0.0, %v1389
          %v1391 = vpop.f32.mrb[0].mxu0
          %v1392 = vadd.f32 0.0, %v1391
          %v1393 = vpop.f32.mrb[0].mxu0
          %v1394 = vadd.f32 0.0, %v1393
          %v1395 = vpop.f32.mrb[0].mxu0
          %v1396 = vadd.f32 0.0, %v1395
          %1397 = vdwg.mxu0
          %v1398 = vld [vmem:[%s586] sm:$0xff]
          %v1399 = vld [vmem:[%s586 + $0x8] sm:$0xff]
          %v1400 = vld [vmem:[%s586 + $0x10] sm:$0xff]
          %v1401 = vld [vmem:[%s586 + $0x18] sm:$0xff]
          %v1402 = vld [vmem:[%s586 + $0x20] sm:$0xff]
          %v1403 = vld [vmem:[%s586 + $0x28] sm:$0xff]
          %v1404 = vld [vmem:[%s586 + $0x30] sm:$0xff]
          %v1405 = vld [vmem:[%s586 + $0x38] sm:$0xff]
          %v1406 = vld [vmem:[%s586 + $0x40] sm:$0xff]
          %v1407 = vld [vmem:[%s586 + $0x48] sm:$0xff]
          %v1408 = vld [vmem:[%s586 + $0x50] sm:$0xff]
          %v1409 = vld [vmem:[%s586 + $0x58] sm:$0xff]
          %v1410 = vld [vmem:[%s586 + $0x60] sm:$0xff]
          %v1411 = vld [vmem:[%s586 + $0x68] sm:$0xff]
          %v1412 = vld [vmem:[%s586 + $0x70] sm:$0xff]
          %v1413 = vld [vmem:[%s586 + $0x78] sm:$0xff]
          %v1414 = vsub.f32 %v1320, %v1322
          %v1415 = vsub.f32 %v1324, %v1326
          %v1416 = vsub.f32 %v1330, %v1332
          %v1417 = vsub.f32 %v1334, %v1336
          %v1418 = vsub.f32 %v1340, %v1342
          %v1419 = vsub.f32 %v1344, %v1346
          %v1420 = vsub.f32 %v1350, %v1352
          %v1421 = vsub.f32 %v1354, %v1356
          %v1422 = vsub.f32 %v1360, %v1362
          %v1423 = vsub.f32 %v1364, %v1366
          %v1424 = vsub.f32 %v1370, %v1372
          %v1425 = vsub.f32 %v1374, %v1376
          %v1426 = vsub.f32 %v1380, %v1382
          %v1427 = vsub.f32 %v1384, %v1386
          %v1428 = vsub.f32 %v1390, %v1392
          %v1429 = vsub.f32 %v1394, %v1396
          %1431 = vset.pattern.permute.xlu0 0
          %1432 = vperm.xlu0 %1431, %v1398
          %v1433 = vpop.permute.xlu0 %1432
          %1436 = vset.pattern.permute.xlu0 0
          %1437 = vperm.xlu0 %1436, %v1399
          %v1438 = vpop.permute.xlu0 %1437
          %1441 = vset.pattern.permute.xlu0 0
          %1442 = vperm.xlu0 %1441, %v1400
          %v1443 = vpop.permute.xlu0 %1442
          %1446 = vset.pattern.permute.xlu0 0
          %1447 = vperm.xlu0 %1446, %v1401
          %v1448 = vpop.permute.xlu0 %1447
          %1451 = vset.pattern.permute.xlu0 0
          %1452 = vperm.xlu0 %1451, %v1402
          %v1453 = vpop.permute.xlu0 %1452
          %1456 = vset.pattern.permute.xlu0 0
          %1457 = vperm.xlu0 %1456, %v1403
          %v1458 = vpop.permute.xlu0 %1457
          %1461 = vset.pattern.permute.xlu0 0
          %1462 = vperm.xlu0 %1461, %v1404
          %v1463 = vpop.permute.xlu0 %1462
          %1466 = vset.pattern.permute.xlu0 0
          %1467 = vperm.xlu0 %1466, %v1405
          %v1468 = vpop.permute.xlu0 %1467
          %1471 = vset.pattern.permute.xlu0 0
          %1472 = vperm.xlu0 %1471, %v1406
          %v1473 = vpop.permute.xlu0 %1472
          %1476 = vset.pattern.permute.xlu0 0
          %1477 = vperm.xlu0 %1476, %v1407
          %v1478 = vpop.permute.xlu0 %1477
          %1481 = vset.pattern.permute.xlu0 0
          %1482 = vperm.xlu0 %1481, %v1408
          %v1483 = vpop.permute.xlu0 %1482
          %1486 = vset.pattern.permute.xlu0 0
          %1487 = vperm.xlu0 %1486, %v1409
          %v1488 = vpop.permute.xlu0 %1487
          %1491 = vset.pattern.permute.xlu0 0
          %1492 = vperm.xlu0 %1491, %v1410
          %v1493 = vpop.permute.xlu0 %1492
          %1496 = vset.pattern.permute.xlu0 0
          %1497 = vperm.xlu0 %1496, %v1411
          %v1498 = vpop.permute.xlu0 %1497
          %1501 = vset.pattern.permute.xlu0 0
          %1502 = vperm.xlu0 %1501, %v1412
          %v1503 = vpop.permute.xlu0 %1502
          %1506 = vset.pattern.permute.xlu0 0
          %1507 = vperm.xlu0 %1506, %v1413
          %v1508 = vpop.permute.xlu0 %1507
          %v1510 = vmul.f32 %v1433, %v1414
          %v1511 = vmul.f32 %v1438, %v1415
          %v1512 = vmul.f32 %v1443, %v1416
          %v1513 = vmul.f32 %v1448, %v1417
          %v1514 = vmul.f32 %v1453, %v1418
          %v1515 = vmul.f32 %v1458, %v1419
          %v1516 = vmul.f32 %v1463, %v1420
          %v1517 = vmul.f32 %v1468, %v1421
          %v1518 = vmul.f32 %v1473, %v1422
          %v1519 = vmul.f32 %v1478, %v1423
          %v1520 = vmul.f32 %v1483, %v1424
          %v1521 = vmul.f32 %v1488, %v1425
          %v1522 = vmul.f32 %v1493, %v1426
          %v1523 = vmul.f32 %v1498, %v1427
          %v1524 = vmul.f32 %v1503, %v1428
          %v1525 = vmul.f32 %v1508, %v1429
          %v1526 = vadd.f32 %v1322, %v1510
          %v1527 = vadd.f32 %v1326, %v1511
          %v1528 = vadd.f32 %v1332, %v1512
          %v1529 = vadd.f32 %v1336, %v1513
          %v1530 = vadd.f32 %v1342, %v1514
          %v1531 = vadd.f32 %v1346, %v1515
          %v1532 = vadd.f32 %v1352, %v1516
          %v1533 = vadd.f32 %v1356, %v1517
          %v1534 = vadd.f32 %v1362, %v1518
          %v1535 = vadd.f32 %v1366, %v1519
          %v1536 = vadd.f32 %v1372, %v1520
          %v1537 = vadd.f32 %v1376, %v1521
          %v1538 = vadd.f32 %v1382, %v1522
          %v1539 = vadd.f32 %v1386, %v1523
          %v1540 = vadd.f32 %v1392, %v1524
          %v1541 = vadd.f32 %v1396, %v1525
          %v1542 = vld [vmem:[%s9] sm:$0xf]
          %v1543 = vld [vmem:[%s9 + $0x4] sm:$0xf]
          %v1544 = vld [vmem:[%s9 + $0x8] sm:$0xf]
          %v1545 = vld [vmem:[%s9 + $0xc] sm:$0xf]
          %v1546 = vld [vmem:[%s9 + $0x10] sm:$0xf]
          %v1547 = vld [vmem:[%s9 + $0x14] sm:$0xf]
          %v1548 = vld [vmem:[%s9 + $0x18] sm:$0xf]
          %v1549 = vld [vmem:[%s9 + $0x1c] sm:$0xf]
          %v1550 = vld [vmem:[%s9 + $0x20] sm:$0xf]
          %v1551 = vld [vmem:[%s9 + $0x24] sm:$0xf]
          %v1552 = vld [vmem:[%s9 + $0x28] sm:$0xf]
          %v1553 = vld [vmem:[%s9 + $0x2c] sm:$0xf]
          %v1554 = vld [vmem:[%s9 + $0x30] sm:$0xf]
          %v1555 = vld [vmem:[%s9 + $0x34] sm:$0xf]
          %v1556 = vld [vmem:[%s9 + $0x38] sm:$0xf]
          %v1557 = vld [vmem:[%s9 + $0x3c] sm:$0xf]
          %v1558 = vld [vmem:[%s10] sm:$0x1]
          %v1560 = vlaneseq
          %v1561 = vshrl.u32 %v1560, 7
          %v1562 = vsub.s32 0, %v1561
          %v1563 = vrot.slane %v1558, %v1562
          %v1581 = vunpack.c.l.b16 %v1125
          %v1582 = vunpack.c.l.b16 %v1126
          %v1583 = vunpack.c.l.b16 %v1127
          %v1584 = vunpack.c.l.b16 %v1128
          %v1585 = vunpack.c.l.b16 %v1129
          %v1586 = vunpack.c.l.b16 %v1130
          %v1587 = vunpack.c.l.b16 %v1131
          %v1588 = vunpack.c.l.b16 %v1132
          %v1589 = vunpack.c.l.b16 %v1133
          %v1590 = vunpack.c.l.b16 %v1134
          %v1591 = vunpack.c.l.b16 %v1135
          %v1592 = vunpack.c.l.b16 %v1136
          %v1593 = vunpack.c.l.b16 %v1137
          %v1594 = vunpack.c.l.b16 %v1138
          %v1595 = vunpack.c.l.b16 %v1139
          %v1596 = vunpack.c.l.b16 %v1140
          %v1597 = vpack.c.b16 %v1582, %v1581
          %v1598 = vpack.c.b16 %v1584, %v1583
          %v1599 = vpack.c.b16 %v1586, %v1585
          %v1600 = vpack.c.b16 %v1588, %v1587
          %v1601 = vpack.c.b16 %v1590, %v1589
          %v1602 = vpack.c.b16 %v1592, %v1591
          %v1603 = vpack.c.b16 %v1594, %v1593
          %v1604 = vpack.c.b16 %v1596, %v1595
          %v1629 = vunpack.c.l.b16 %v1542
          %v1630 = vunpack.c.l.b16 %v1543
          %v1631 = vunpack.c.l.b16 %v1544
          %v1632 = vunpack.c.l.b16 %v1545
          %v1633 = vunpack.c.l.b16 %v1546
          %v1634 = vunpack.c.l.b16 %v1547
          %v1635 = vunpack.c.l.b16 %v1548
          %v1636 = vunpack.c.l.b16 %v1549
          %v1637 = vunpack.c.l.b16 %v1550
          %v1638 = vunpack.c.l.b16 %v1551
          %v1639 = vunpack.c.l.b16 %v1552
          %v1640 = vunpack.c.l.b16 %v1553
          %v1641 = vunpack.c.l.b16 %v1554
          %v1642 = vunpack.c.l.b16 %v1555
          %v1643 = vunpack.c.l.b16 %v1556
          %v1644 = vunpack.c.l.b16 %v1557
          %v1645 = vpack.c.b16 %v1630, %v1629
          %v1646 = vpack.c.b16 %v1632, %v1631
          %v1647 = vpack.c.b16 %v1634, %v1633
          %v1648 = vpack.c.b16 %v1636, %v1635
          %v1649 = vpack.c.b16 %v1638, %v1637
          %v1650 = vpack.c.b16 %v1640, %v1639
          %v1651 = vpack.c.b16 %v1642, %v1641
          %v1652 = vpack.c.b16 %v1644, %v1643
          %1661 = vmatprep.subr.bf16.mxu0 0
          %1662 = vmatpush1.bf16.msra.mxu0 %v1645
          %1663 = vmatprep.subr.bf16.mxu0 0
          %1664 = vmatpush1.bf16.msra.mxu0 %v1646
          %1665 = vmatprep.subr.bf16.mxu0 0
          %1666 = vmatpush1.bf16.msra.mxu0 %v1647
          %1667 = vmatprep.subr.bf16.mxu0 0
          %1668 = vmatpush1.bf16.msra.mxu0 %v1648
          %1669 = vmatprep.subr.bf16.mxu0 0
          %1670 = vmatpush1.bf16.msra.mxu0 %v1649
          %1671 = vmatprep.subr.bf16.mxu0 0
          %1672 = vmatpush1.bf16.msra.mxu0 %v1650
          %1673 = vmatprep.subr.bf16.mxu0 0
          %1674 = vmatpush1.bf16.msra.mxu0 %v1651
          %1675 = vmatprep.subr.bf16.mxu0 0
          %1676 = vmatpush1.bf16.msra.mxu0 %v1652
          %1677 = vmatprep.subr.bf16.mxu0 0
          %1678 = vmatpush1.bf16.msra.mxu0 0
          %1679 = vmatprep.subr.bf16.mxu0 0
          %1680 = vmatpush1.bf16.msra.mxu0 0
          %1681 = vmatprep.subr.bf16.mxu0 0
          %1682 = vmatpush1.bf16.msra.mxu0 0
          %1683 = vmatprep.subr.bf16.mxu0 0
          %1684 = vmatpush1.bf16.msra.mxu0 0
          %1685 = vmatprep.subr.bf16.mxu0 0
          %1686 = vmatpush1.bf16.msra.mxu0 0
          %1687 = vmatprep.subr.bf16.mxu0 0
          %1688 = vmatpush1.bf16.msra.mxu0 0
          %1689 = vmatprep.subr.bf16.mxu0 0
          %1690 = vmatpush1.bf16.msra.mxu0 0
          %1691 = vmatprep.subr.bf16.mxu0 0
          %1692 = vmatpush1.bf16.msra.mxu0 0
          %1693 = vmatprep.mubr.bf16.mxu0 0
          %1694 = vmatmul.mubr.bf16.gmra.mrb[0].mxu0 %v1597
          %v1695 = vpop.f32.mrb[0].mxu0
          %v1696 = vadd.f32 %v1563, %v1695
          %v1697 = vpop.f32.mrb[0].mxu0
          %v1698 = vpop.f32.mrb[0].mxu0
          %v1699 = vadd.f32 %v1563, %v1698
          %v1700 = vpop.f32.mrb[0].mxu0
          %1701 = vmatprep.mubr.bf16.mxu0 0
          %1702 = vmatmul.mubr.bf16.gmra.mrb[0].mxu0 %v1598
          %v1703 = vpop.f32.mrb[0].mxu0
          %v1704 = vadd.f32 %v1563, %v1703
          %v1705 = vpop.f32.mrb[0].mxu0
          %v1706 = vpop.f32.mrb[0].mxu0
          %v1707 = vadd.f32 %v1563, %v1706
          %v1708 = vpop.f32.mrb[0].mxu0
          %1709 = vmatprep.mubr.bf16.mxu0 0
          %1710 = vmatmul.mubr.bf16.gmra.mrb[0].mxu0 %v1599
          %v1711 = vpop.f32.mrb[0].mxu0
          %v1712 = vadd.f32 %v1563, %v1711
          %v1713 = vpop.f32.mrb[0].mxu0
          %v1714 = vpop.f32.mrb[0].mxu0
          %v1715 = vadd.f32 %v1563, %v1714
          %v1716 = vpop.f32.mrb[0].mxu0
          %1717 = vmatprep.mubr.bf16.mxu0 0
          %1718 = vmatmul.mubr.bf16.gmra.mrb[0].mxu0 %v1600
          %v1719 = vpop.f32.mrb[0].mxu0
          %v1720 = vadd.f32 %v1563, %v1719
          %v1721 = vpop.f32.mrb[0].mxu0
          %v1722 = vpop.f32.mrb[0].mxu0
          %v1723 = vadd.f32 %v1563, %v1722
          %v1724 = vpop.f32.mrb[0].mxu0
          %1725 = vmatprep.mubr.bf16.mxu0 0
          %1726 = vmatmul.mubr.bf16.gmra.mrb[0].mxu0 %v1601
          %v1727 = vpop.f32.mrb[0].mxu0
          %v1728 = vadd.f32 %v1563, %v1727
          %v1729 = vpop.f32.mrb[0].mxu0
          %v1730 = vpop.f32.mrb[0].mxu0
          %v1731 = vadd.f32 %v1563, %v1730
          %v1732 = vpop.f32.mrb[0].mxu0
          %1733 = vmatprep.mubr.bf16.mxu0 0
          %1734 = vmatmul.mubr.bf16.gmra.mrb[0].mxu0 %v1602
          %v1735 = vpop.f32.mrb[0].mxu0
          %v1736 = vadd.f32 %v1563, %v1735
          %v1737 = vpop.f32.mrb[0].mxu0
          %v1738 = vpop.f32.mrb[0].mxu0
          %v1739 = vadd.f32 %v1563, %v1738
          %v1740 = vpop.f32.mrb[0].mxu0
          %1741 = vmatprep.mubr.bf16.mxu0 0
          %1742 = vmatmul.mubr.bf16.gmra.mrb[0].mxu0 %v1603
          %v1743 = vpop.f32.mrb[0].mxu0
          %v1744 = vadd.f32 %v1563, %v1743
          %v1745 = vpop.f32.mrb[0].mxu0
          %v1746 = vpop.f32.mrb[0].mxu0
          %v1747 = vadd.f32 %v1563, %v1746
          %v1748 = vpop.f32.mrb[0].mxu0
          %1749 = vmatprep.mubr.bf16.mxu0 0
          %1750 = vmatmul.mubr.bf16.gmra.mrb[0].mxu0 %v1604
          %v1751 = vpop.f32.mrb[0].mxu0
          %v1752 = vadd.f32 %v1563, %v1751
          %v1753 = vpop.f32.mrb[0].mxu0
          %v1754 = vpop.f32.mrb[0].mxu0
          %v1755 = vadd.f32 %v1563, %v1754
          %v1756 = vpop.f32.mrb[0].mxu0
          %1757 = vdwg.mxu0
          %v1758 = vxor.u32 %v1696, 2147483648
          %v1759 = vxor.u32 %v1699, 2147483648
          %v1760 = vxor.u32 %v1704, 2147483648
          %v1761 = vxor.u32 %v1707, 2147483648
          %v1762 = vxor.u32 %v1712, 2147483648
          %v1763 = vxor.u32 %v1715, 2147483648
          %v1764 = vxor.u32 %v1720, 2147483648
          %v1765 = vxor.u32 %v1723, 2147483648
          %v1766 = vxor.u32 %v1728, 2147483648
          %v1767 = vxor.u32 %v1731, 2147483648
          %v1768 = vxor.u32 %v1736, 2147483648
          %v1769 = vxor.u32 %v1739, 2147483648
          %v1770 = vxor.u32 %v1744, 2147483648
          %v1771 = vxor.u32 %v1747, 2147483648
          %v1772 = vxor.u32 %v1752, 2147483648
          %v1773 = vxor.u32 %v1755, 2147483648
          %v1774 = vmul.f32 %v1758, 1.442695
          %v1775 = vpow.pop %v1774
          %v1776 = vmul.f32 %v1759, 1.442695
          %v1777 = vpow.pop %v1776
          %v1778 = vmul.f32 %v1760, 1.442695
          %v1779 = vpow.pop %v1778
          %v1780 = vmul.f32 %v1761, 1.442695
          %v1781 = vpow.pop %v1780
          %v1782 = vmul.f32 %v1762, 1.442695
          %v1783 = vpow.pop %v1782
          %v1784 = vmul.f32 %v1763, 1.442695
          %v1785 = vpow.pop %v1784
          %v1786 = vmul.f32 %v1764, 1.442695
          %v1787 = vpow.pop %v1786
          %v1788 = vmul.f32 %v1765, 1.442695
          %v1789 = vpow.pop %v1788
          %v1790 = vmul.f32 %v1766, 1.442695
          %v1791 = vpow.pop %v1790
          %v1792 = vmul.f32 %v1767, 1.442695
          %v1793 = vpow.pop %v1792
          %v1794 = vmul.f32 %v1768, 1.442695
          %v1795 = vpow.pop %v1794
          %v1796 = vmul.f32 %v1769, 1.442695
          %v1797 = vpow.pop %v1796
          %v1798 = vmul.f32 %v1770, 1.442695
          %v1799 = vpow.pop %v1798
          %v1800 = vmul.f32 %v1771, 1.442695
          %v1801 = vpow.pop %v1800
          %v1802 = vmul.f32 %v1772, 1.442695
          %v1803 = vpow.pop %v1802
          %v1804 = vmul.f32 %v1773, 1.442695
          %v1805 = vpow.pop %v1804
          %v1806 = vadd.f32 %v1775, 1.0
          %v1807 = vadd.f32 %v1777, 1.0
          %v1808 = vadd.f32 %v1779, 1.0
          %v1809 = vadd.f32 %v1781, 1.0
          %v1810 = vadd.f32 %v1783, 1.0
          %v1811 = vadd.f32 %v1785, 1.0
          %v1812 = vadd.f32 %v1787, 1.0
          %v1813 = vadd.f32 %v1789, 1.0
          %v1814 = vadd.f32 %v1791, 1.0
          %v1815 = vadd.f32 %v1793, 1.0
          %v1816 = vadd.f32 %v1795, 1.0
          %v1817 = vadd.f32 %v1797, 1.0
          %v1818 = vadd.f32 %v1799, 1.0
          %v1819 = vadd.f32 %v1801, 1.0
          %v1820 = vadd.f32 %v1803, 1.0
          %v1821 = vadd.f32 %v1805, 1.0
          %v1822 = vrcp.pop %v1806
          %v1823 = vmul.f32 1.0, %v1822
          %v1824 = vrcp.pop %v1807
          %v1825 = vmul.f32 1.0, %v1824
          %v1826 = vrcp.pop %v1808
          %v1827 = vmul.f32 1.0, %v1826
          %v1828 = vrcp.pop %v1809
          %v1829 = vmul.f32 1.0, %v1828
          %v1830 = vrcp.pop %v1810
          %v1831 = vmul.f32 1.0, %v1830
          %v1832 = vrcp.pop %v1811
          %v1833 = vmul.f32 1.0, %v1832
          %v1834 = vrcp.pop %v1812
          %v1835 = vmul.f32 1.0, %v1834
          %v1836 = vrcp.pop %v1813
          %v1837 = vmul.f32 1.0, %v1836
          %v1838 = vrcp.pop %v1814
          %v1839 = vmul.f32 1.0, %v1838
          %v1840 = vrcp.pop %v1815
          %v1841 = vmul.f32 1.0, %v1840
          %v1842 = vrcp.pop %v1816
          %v1843 = vmul.f32 1.0, %v1842
          %v1844 = vrcp.pop %v1817
          %v1845 = vmul.f32 1.0, %v1844
          %v1846 = vrcp.pop %v1818
          %v1847 = vmul.f32 1.0, %v1846
          %v1848 = vrcp.pop %v1819
          %v1849 = vmul.f32 1.0, %v1848
          %v1850 = vrcp.pop %v1820
          %v1851 = vmul.f32 1.0, %v1850
          %v1852 = vrcp.pop %v1821
          %v1853 = vmul.f32 1.0, %v1852
          %v1854 = vld [vmem:[#allocation2] sm:$0xff]
          %v1855 = vld [vmem:[#allocation2 + $0x8] sm:$0xff]
          %v1856 = vld [vmem:[#allocation2 + $0x10] sm:$0xff]
          %v1857 = vld [vmem:[#allocation2 + $0x18] sm:$0xff]
          %v1858 = vld [vmem:[#allocation2 + $0x20] sm:$0xff]
          %v1859 = vld [vmem:[#allocation2 + $0x28] sm:$0xff]
          %v1860 = vld [vmem:[#allocation2 + $0x30] sm:$0xff]
          %v1861 = vld [vmem:[#allocation2 + $0x38] sm:$0xff]
          %v1862 = vld [vmem:[#allocation2 + $0x40] sm:$0xff]
          %v1863 = vld [vmem:[#allocation2 + $0x48] sm:$0xff]
          %v1864 = vld [vmem:[#allocation2 + $0x50] sm:$0xff]
          %v1865 = vld [vmem:[#allocation2 + $0x58] sm:$0xff]
          %v1866 = vld [vmem:[#allocation2 + $0x60] sm:$0xff]
          %v1867 = vld [vmem:[#allocation2 + $0x68] sm:$0xff]
          %v1868 = vld [vmem:[#allocation2 + $0x70] sm:$0xff]
          %v1869 = vld [vmem:[#allocation2 + $0x78] sm:$0xff]
          %v1870 = vld [vmem:[%s592] sm:$0xff]
          %v1871 = vld [vmem:[%s592 + $0x8] sm:$0xff]
          %v1872 = vld [vmem:[%s592 + $0x10] sm:$0xff]
          %v1873 = vld [vmem:[%s592 + $0x18] sm:$0xff]
          %v1874 = vld [vmem:[%s592 + $0x20] sm:$0xff]
          %v1875 = vld [vmem:[%s592 + $0x28] sm:$0xff]
          %v1876 = vld [vmem:[%s592 + $0x30] sm:$0xff]
          %v1877 = vld [vmem:[%s592 + $0x38] sm:$0xff]
          %v1878 = vld [vmem:[%s592 + $0x40] sm:$0xff]
          %v1879 = vld [vmem:[%s592 + $0x48] sm:$0xff]
          %v1880 = vld [vmem:[%s592 + $0x50] sm:$0xff]
          %v1881 = vld [vmem:[%s592 + $0x58] sm:$0xff]
          %v1882 = vld [vmem:[%s592 + $0x60] sm:$0xff]
          %v1883 = vld [vmem:[%s592 + $0x68] sm:$0xff]
          %v1884 = vld [vmem:[%s592 + $0x70] sm:$0xff]
          %v1885 = vld [vmem:[%s592 + $0x78] sm:$0xff]
          %1887 = vset.pattern.permute.xlu0 0
          %1888 = vperm.xlu0 %1887, %v1870
          %v1889 = vpop.permute.xlu0 %1888
          %1892 = vset.pattern.permute.xlu0 0
          %1893 = vperm.xlu0 %1892, %v1871
          %v1894 = vpop.permute.xlu0 %1893
          %1897 = vset.pattern.permute.xlu0 0
          %1898 = vperm.xlu0 %1897, %v1872
          %v1899 = vpop.permute.xlu0 %1898
          %1902 = vset.pattern.permute.xlu0 0
          %1903 = vperm.xlu0 %1902, %v1873
          %v1904 = vpop.permute.xlu0 %1903
          %1907 = vset.pattern.permute.xlu0 0
          %1908 = vperm.xlu0 %1907, %v1874
          %v1909 = vpop.permute.xlu0 %1908
          %1912 = vset.pattern.permute.xlu0 0
          %1913 = vperm.xlu0 %1912, %v1875
          %v1914 = vpop.permute.xlu0 %1913
          %1917 = vset.pattern.permute.xlu0 0
          %1918 = vperm.xlu0 %1917, %v1876
          %v1919 = vpop.permute.xlu0 %1918
          %1922 = vset.pattern.permute.xlu0 0
          %1923 = vperm.xlu0 %1922, %v1877
          %v1924 = vpop.permute.xlu0 %1923
          %1927 = vset.pattern.permute.xlu0 0
          %1928 = vperm.xlu0 %1927, %v1878
          %v1929 = vpop.permute.xlu0 %1928
          %1932 = vset.pattern.permute.xlu0 0
          %1933 = vperm.xlu0 %1932, %v1879
          %v1934 = vpop.permute.xlu0 %1933
          %1937 = vset.pattern.permute.xlu0 0
          %1938 = vperm.xlu0 %1937, %v1880
          %v1939 = vpop.permute.xlu0 %1938
          %1942 = vset.pattern.permute.xlu0 0
          %1943 = vperm.xlu0 %1942, %v1881
          %v1944 = vpop.permute.xlu0 %1943
          %1947 = vset.pattern.permute.xlu0 0
          %1948 = vperm.xlu0 %1947, %v1882
          %v1949 = vpop.permute.xlu0 %1948
          %1952 = vset.pattern.permute.xlu0 0
          %1953 = vperm.xlu0 %1952, %v1883
          %v1954 = vpop.permute.xlu0 %1953
          %1957 = vset.pattern.permute.xlu0 0
          %1958 = vperm.xlu0 %1957, %v1884
          %v1959 = vpop.permute.xlu0 %1958
          %1962 = vset.pattern.permute.xlu0 0
          %1963 = vperm.xlu0 %1962, %v1885
          %v1964 = vpop.permute.xlu0 %1963
          %v1966 = vmul.f32 %v1854, %v1889
          %v1967 = vmul.f32 %v1855, %v1894
          %v1968 = vmul.f32 %v1856, %v1899
          %v1969 = vmul.f32 %v1857, %v1904
          %v1970 = vmul.f32 %v1858, %v1909
          %v1971 = vmul.f32 %v1859, %v1914
          %v1972 = vmul.f32 %v1860, %v1919
          %v1973 = vmul.f32 %v1861, %v1924
          %v1974 = vmul.f32 %v1862, %v1929
          %v1975 = vmul.f32 %v1863, %v1934
          %v1976 = vmul.f32 %v1864, %v1939
          %v1977 = vmul.f32 %v1865, %v1944
          %v1978 = vmul.f32 %v1866, %v1949
          %v1979 = vmul.f32 %v1867, %v1954
          %v1980 = vmul.f32 %v1868, %v1959
          %v1981 = vmul.f32 %v1869, %v1964
          %v1982 = vunpack.c.l.bf16 %v1125
          %v1983 = vunpack.c.l.bf16 %v1126
          %v1984 = vunpack.c.l.bf16 %v1127
          %v1985 = vunpack.c.l.bf16 %v1128
          %v1986 = vunpack.c.l.bf16 %v1129
          %v1987 = vunpack.c.l.bf16 %v1130
          %v1988 = vunpack.c.l.bf16 %v1131
          %v1989 = vunpack.c.l.bf16 %v1132
          %v1990 = vunpack.c.l.bf16 %v1133
          %v1991 = vunpack.c.l.bf16 %v1134
          %v1992 = vunpack.c.l.bf16 %v1135
          %v1993 = vunpack.c.l.bf16 %v1136
          %v1994 = vunpack.c.l.bf16 %v1137
          %v1995 = vunpack.c.l.bf16 %v1138
          %v1996 = vunpack.c.l.bf16 %v1139
          %v1997 = vunpack.c.l.bf16 %v1140
          %v1998 = vadd.f32 %v1966, %v1526
          %v1999 = vadd.f32 %v1967, %v1527
          %v2000 = vadd.f32 %v1968, %v1528
          %v2001 = vadd.f32 %v1969, %v1529
          %v2002 = vadd.f32 %v1970, %v1530
          %v2003 = vadd.f32 %v1971, %v1531
          %v2004 = vadd.f32 %v1972, %v1532
          %v2005 = vadd.f32 %v1973, %v1533
          %v2006 = vadd.f32 %v1974, %v1534
          %v2007 = vadd.f32 %v1975, %v1535
          %v2008 = vadd.f32 %v1976, %v1536
          %v2009 = vadd.f32 %v1977, %v1537
          %v2010 = vadd.f32 %v1978, %v1538
          %v2011 = vadd.f32 %v1979, %v1539
          %v2012 = vadd.f32 %v1980, %v1540
          %v2013 = vadd.f32 %v1981, %v1541
          %v2014 = vsub.f32 %v1998, %v1982
          %v2015 = vsub.f32 %v1999, %v1983
          %v2016 = vsub.f32 %v2000, %v1984
          %v2017 = vsub.f32 %v2001, %v1985
          %v2018 = vsub.f32 %v2002, %v1986
          %v2019 = vsub.f32 %v2003, %v1987
          %v2020 = vsub.f32 %v2004, %v1988
          %v2021 = vsub.f32 %v2005, %v1989
          %v2022 = vsub.f32 %v2006, %v1990
          %v2023 = vsub.f32 %v2007, %v1991
          %v2024 = vsub.f32 %v2008, %v1992
          %v2025 = vsub.f32 %v2009, %v1993
          %v2026 = vsub.f32 %v2010, %v1994
          %v2027 = vsub.f32 %v2011, %v1995
          %v2028 = vsub.f32 %v2012, %v1996
          %v2029 = vsub.f32 %v2013, %v1997
          %v2030 = vmul.f32 %v1823, %v2014
          %v2031 = vmul.f32 %v1825, %v2015
          %v2032 = vmul.f32 %v1827, %v2016
          %v2033 = vmul.f32 %v1829, %v2017
          %v2034 = vmul.f32 %v1831, %v2018
          %v2035 = vmul.f32 %v1833, %v2019
          %v2036 = vmul.f32 %v1835, %v2020
          %v2037 = vmul.f32 %v1837, %v2021
          %v2038 = vmul.f32 %v1839, %v2022
          %v2039 = vmul.f32 %v1841, %v2023
          %v2040 = vmul.f32 %v1843, %v2024
          %v2041 = vmul.f32 %v1845, %v2025
          %v2042 = vmul.f32 %v1847, %v2026
          %v2043 = vmul.f32 %v1849, %v2027
          %v2044 = vmul.f32 %v1851, %v2028
          %v2045 = vmul.f32 %v1853, %v2029
          %v2046 = vadd.f32 %v1982, %v2030
          %v2047 = vadd.f32 %v1983, %v2031
          %v2048 = vadd.f32 %v1984, %v2032
          %v2049 = vadd.f32 %v1985, %v2033
          %v2050 = vadd.f32 %v1986, %v2034
          %v2051 = vadd.f32 %v1987, %v2035
          %v2052 = vadd.f32 %v1988, %v2036
          %v2053 = vadd.f32 %v1989, %v2037
          %v2054 = vadd.f32 %v1990, %v2038
          %v2055 = vadd.f32 %v1991, %v2039
          %v2056 = vadd.f32 %v1992, %v2040
          %v2057 = vadd.f32 %v1993, %v2041
          %v2058 = vadd.f32 %v1994, %v2042
          %v2059 = vadd.f32 %v1995, %v2043
          %v2060 = vadd.f32 %v1996, %v2044
          %v2061 = vadd.f32 %v1997, %v2045
          %v2062 = vmax.f32 %v2046, 0.0
          %v2063 = vmax.f32 %v2047, 0.0
          %v2064 = vmax.f32 %v2048, 0.0
          %v2065 = vmax.f32 %v2049, 0.0
          %v2066 = vmax.f32 %v2050, 0.0
          %v2067 = vmax.f32 %v2051, 0.0
          %v2068 = vmax.f32 %v2052, 0.0
          %v2069 = vmax.f32 %v2053, 0.0
          %v2070 = vmax.f32 %v2054, 0.0
          %v2071 = vmax.f32 %v2055, 0.0
          %v2072 = vmax.f32 %v2056, 0.0
          %v2073 = vmax.f32 %v2057, 0.0
          %v2074 = vmax.f32 %v2058, 0.0
          %v2075 = vmax.f32 %v2059, 0.0
          %v2076 = vmax.f32 %v2060, 0.0
          %v2077 = vmax.f32 %v2061, 0.0
          %2078 = vst [vmem:[%s561] sm:$0xff] %v2062
          %2079 = vst [vmem:[%s561 + $0x8] sm:$0xff] %v2063
          %2080 = vst [vmem:[%s561 + $0x10] sm:$0xff] %v2064
          %2081 = vst [vmem:[%s561 + $0x18] sm:$0xff] %v2065
          %2082 = vst [vmem:[%s561 + $0x20] sm:$0xff] %v2066
          %2083 = vst [vmem:[%s561 + $0x28] sm:$0xff] %v2067
          %2084 = vst [vmem:[%s561 + $0x30] sm:$0xff] %v2068
          %2085 = vst [vmem:[%s561 + $0x38] sm:$0xff] %v2069
          %2086 = vst [vmem:[%s561 + $0x40] sm:$0xff] %v2070
          %2087 = vst [vmem:[%s561 + $0x48] sm:$0xff] %v2071
          %2088 = vst [vmem:[%s561 + $0x50] sm:$0xff] %v2072
          %2089 = vst [vmem:[%s561 + $0x58] sm:$0xff] %v2073
          %2090 = vst [vmem:[%s561 + $0x60] sm:$0xff] %v2074
          %2091 = vst [vmem:[%s561 + $0x68] sm:$0xff] %v2075
          %2092 = vst [vmem:[%s561 + $0x70] sm:$0xff] %v2076
          %2093 = vst [vmem:[%s561 + $0x78] sm:$0xff] %v2077
        $region103: #{tpu_custom_call.1} parent=82 // pred_fallthru
          _
        %s2094 = sand.u32 %s315, 1
        %s2095 = scalar_lea.sflag [#allocation6], %s2094
        %s2096 = sand.u32 %s315, 1
        %s2097 = smul.addr %s2096, 128
        %s2098 = scalar_lea.vmem [#allocation9], %s2097
        // Predicated region
        $region104: #{tpu_custom_call.1} parent=82 // pred_check
          %p2099 = pneg %p325
        $region105: #{tpu_custom_call.1} parent=82 // pred_check_branch
          %2101 = sbr.rel (%p2099) target = $region107
        $region106: #{tpu_custom_call.1} parent=82 // pred_region
          %s2102 = smul.u32 16, %s31
          %s2104 = ssub.s32 2048, 2048
          %2105 = vsyncadd %s2095, %s2104
          %s2106 = smul.addr %s2102, 128
          %s2107 = scalar_lea.hbm %s11, %s2106
          %s2108 = sshll.u32 %s2098, 4
          %s2109 = int_to_ptr.vmem [resolvable:$true] %s2108
          %2114 = dma.vmem_to_hbm [thread:$0]  %s2109, 2048, %s2107, %s2095, 128, 128, 8
        $region107: #{tpu_custom_call.1} parent=82 // pred_fallthru
          _
      $region83: #{tpu_custom_call.1} parent=5 // pred_fallthru
        _
      %p2115 = scmp.le.s32.totalorder 2, %s22
      // Predicated region
      $region108: #{tpu_custom_call.1} parent=5 // pred_check
        %p2116 = pneg %p2115
      $region109: #{tpu_custom_call.1} parent=5 // pred_check_branch
        %2118 = sbr.rel (%p2116) target = $region111
      $region110: #{tpu_custom_call.1} parent=5 // pred_region
        %s2119 = ssub.s32 %s22, 2
        // Predicated region
        $region112: #{tpu_custom_call.1} parent=110 // pred_check
          %p2120 = pneg %p331
        $region113: #{tpu_custom_call.1} parent=110 // pred_check_branch
          %2122 = sbr.rel (%p2120) target = $region115
        $region114: #{tpu_custom_call.1} parent=110 // pred_region
          %s2123 = sand.u32 %s316, 1
          %s2124 = scalar_lea.sflag [#allocation6], %s2123
          %s2125 = sand.u32 %s316, 1
          %s2126 = smul.addr %s2125, 128
          %s2127 = scalar_lea.vmem [#allocation9], %s2126
          %2128 = dma.done %s2124, 2048
        $region115: #{tpu_custom_call.1} parent=110 // pred_fallthru
          _
      $region111: #{tpu_custom_call.1} parent=5 // pred_fallthru
        _
    $region6: #{tpu_custom_call.1} parent=1 // loop_footer
      %s26 = sadd.s32 1, %s22
    $region7: #{tpu_custom_call.1} parent=1 // loop_footer_branch
      %21 = sbr.rel target = $region3
    $region8: #{tpu_custom_call.1} parent=1 // loop_exit
      _
    %2129 = vsyncpa [#allocation5], 1
    %s2130 = scalar_lea.sflag [#allocation5], 1
    %2131 = vsyncpa %s2130, 1
    %2132 = vsyncpa [#allocation8], 1
    %2133 = vsyncpa [#allocation6], 1
    %s2134 = scalar_lea.sflag [#allocation6], 1
    %2135 = vsyncpa %s2134, 1

</llo_original>
